<compile_context>
chip_gen: v5e
topology: v5e:2x2
jax: 0.10.0
libtpu: 0.0.40
codegen_flags: <defaults>
</compile_context>

<pallas_src>
import functools

import numpy as np

import jax
import jax.numpy as jnp
from jax.experimental import pallas as pl
from jax.experimental.pallas import tpu as pltpu


def _linear_resize_matrix(n_out, n_in):
    """Dense 1-D linear-interpolation matrix (align_corners=True, like
    F.upsample_bilinear)."""
    if n_in == 1 or n_out == 1:
        m = np.zeros((n_out, n_in), np.float32)
        m[:, 0] = 1.0
        return m
    src = np.arange(n_out) * (n_in - 1) / (n_out - 1)
    lo = np.floor(src).astype(np.int64)
    frac = (src - lo).astype(np.float32)
    lo_c = np.clip(lo, 0, n_in - 1)
    hi_c = np.clip(lo + 1, 0, n_in - 1)
    m = np.zeros((n_out, n_in), np.float32)
    m[np.arange(n_out), lo_c] += 1.0 - frac
    m[np.arange(n_out), hi_c] += frac
    return m


# ----------------------------------------------------------------------------
# Fused kernel: one grid step == one group of `bpg` batch elements, everything
# VMEM-resident.  Only the final (lane-dense) heatmap slab touches HBM.
# ----------------------------------------------------------------------------
def _recenternet_fused_kernel(x_ref, ws_ref, bs_ref, w1_ref, b1_ref,
                              w2_ref, b2_ref, wh_ref, bh_ref, up_ref,
                              out_ref, pad_ref, *, bpg, ho, wo, width, nk):
    f32, bf16 = jnp.float32, jnp.bfloat16
    m_img = ho * wo
    m = bpg * m_img                                   # folded matmul M (>=128)

    # ---- stem: 3x3 / stride-2 / pad-1 conv as ONE K-fused dot over the 4
    #      space-to-depth taps (input already haloed + s2d + bf16 in wrapper).
    x = x_ref[...]                                    # [bpg, ho+1, wo+1, cp] bf16
    cp = x.shape[-1]
    xcat = jnp.concatenate(
        [x[:, a:a + ho, b:b + wo, :] for a in range(2) for b in range(2)],
        axis=-1).reshape(m, 4 * cp)
    h0 = jnp.maximum(
        jnp.dot(xcat, ws_ref[...], preferred_element_type=f32) + bs_ref[...],
        0.0)                                          # [m, width] f32 (residual)

    # ---- zero only the halo ring once; interior is always overwritten.
    zrow = jnp.zeros((bpg, 1, wo + 2, width), f32)
    zcol = jnp.zeros((bpg, ho + 2, 1, width), f32)
    pad_ref[:, 0:1, :, :] = zrow
    pad_ref[:, ho + 1:ho + 2, :, :] = zrow
    pad_ref[:, :, 0:1, :] = zcol
    pad_ref[:, :, wo + 1:wo + 2, :] = zcol

    def conv3x3(h, w_ref):
        # 3x3 / pad-1 conv as ONE K-fused dot ([m, 9*width] @ [9*width, width]).
        pad_ref[:, 1:1 + ho, 1:1 + wo, :] = h.reshape(bpg, ho, wo, width)
        p = pad_ref[...]
        xc = jnp.concatenate(
            [p[:, i:i + ho, j:j + wo, :] for i in range(3) for j in range(3)],
            axis=-1).reshape(m, 9 * width).astype(bf16)
        return jnp.dot(xc, w_ref[...], preferred_element_type=f32)

    # ---- residual basic block (conv-relu-conv + identity, relu).
    h1 = jnp.maximum(conv3x3(h0, w1_ref) + b1_ref[...], 0.0)
    h2 = jnp.maximum(conv3x3(h1, w2_ref) + b2_ref[...] + h0, 0.0)

    # ---- 1x1 score head (already sliced to num_keypoints channels).
    heat = jnp.dot(h2.astype(bf16), wh_ref[...], preferred_element_type=f32)
    heat = heat + bh_ref[...]                         # [m, nk] f32

    # ---- transposed bilinear upsample + sigmoid: [bpg*nk, m_img] @
    #      [m_img, Hout*Wout] so the result / store is lane-dense (N=256).
    if nk == 1:
        heat_t = heat.reshape(bpg, m_img)
    else:
        heat_t = jnp.transpose(heat.reshape(bpg, m_img, nk),
                               (0, 2, 1)).reshape(bpg * nk, m_img)
    up = jnp.dot(heat_t.astype(bf16), up_ref[...], preferred_element_type=f32)
    out_ref[...] = jax.nn.sigmoid(up).reshape(bpg, nk, up.shape[-1])


# ----------------------------------------------------------------------------
# RecenterNet (Pallas)
# ----------------------------------------------------------------------------
class RecenterNetPallas:
    def __init__(self, num_keypoints=1, img_height=16, img_width=16,
                 width=16, head_channels=8, seed=0):
        assert img_height % 2 == 0 and img_width % 2 == 0
        self.num_keypoints = num_keypoints
        self.img_height = img_height
        self.img_width = img_width
        self.width = width
        self.cin = 3
        self.ho = img_height // 2
        self.wo = img_width // 2
        self.cp = ((4 * self.cin + 7) // 8) * 8        # padded s2d channel dim

        key = jax.random.PRNGKey(seed)
        ks = jax.random.split(key, 4)

        def init_conv(k, cout, cin, kh, kw):
            fan_in = cin * kh * kw
            w = jax.random.normal(k, (cout, cin, kh, kw), jnp.float32) * (2.0 / fan_in) ** 0.5
            b = jnp.zeros((cout,), jnp.float32)
            return w, b

        cin, nk, cp = self.cin, num_keypoints, self.cp
        # PyTorch-layout parameters ([Cout, Cin, KH, KW]).
        self.w_stem, self.b_stem = init_conv(ks[0], width, cin, 3, 3)
        self.w1, self.b1 = init_conv(ks[1], width, width, 3, 3)
        self.w2, self.b2 = init_conv(ks[2], width, width, 3, 3)
        self.w_head, self.b_head = init_conv(ks[3], head_channels, width, 1, 1)

        # ---- weight repacking hoisted out of the forward pass (bf16 MXU
        # operands, K-fused so each conv is a single wide-K dot).
        # stem (stride-2 3x3) -> 4 taps over the space-to-depth (2x2) input:
        # tap (a,b), channel (di,dj,c) -> w[:, c, 2a+di, 2b+dj] (zero if OOB).
        w_np = np.asarray(self.w_stem)                            # [Cout, Cin, 3, 3]
        taps = np.zeros((2, 2, 2, 2, cin, width), np.float32)     # [a,b,di,dj,Cin,Cout]
        for a in range(2):
            for b in range(2):
                for di in range(2):
                    for dj in range(2):
                        i, j = 2 * a + di, 2 * b + dj
                        if i < 3 and j < 3:
                            taps[a, b, di, dj] = w_np[:, :, i, j].T
        taps = taps.reshape(4, 4 * cin, width)
        taps_p = np.zeros((4, cp, width), np.float32)              # pad 12 -> 16 lanes
        taps_p[:, :4 * cin, :] = taps
        self.w_stem_fused = jnp.asarray(taps_p.reshape(4 * cp, width), dtype=jnp.bfloat16)

        def pack_3x3_fused(w):                                     # -> [9*Cin, Cout] bf16
            cout, ci = w.shape[0], w.shape[1]
            wt = np.transpose(np.asarray(w), (2, 3, 1, 0)).reshape(9 * ci, cout)
            return jnp.asarray(wt, dtype=jnp.bfloat16)
        self.w1_fused = pack_3x3_fused(self.w1)
        self.w2_fused = pack_3x3_fused(self.w2)

        # head: keep only the first num_keypoints channels (forward() discards
        # the rest), so downstream upsample/sigmoid work shrinks accordingly.
        self.w_head_kp = jnp.asarray(np.asarray(self.w_head)[:nk, :, 0, 0].T,
                                     dtype=jnp.bfloat16)           # [width, nk]
        self.b_head_kp = self.b_head[:nk].reshape(1, nk).astype(jnp.float32)

        self.b_stem_row = self.b_stem.reshape(1, width)
        self.b1_row = self.b1.reshape(1, width)
        self.b2_row = self.b2.reshape(1, width)

        # Precomputed separable bilinear upsample, stored TRANSPOSED so the
        # in-kernel matmul is [bk, m_img] @ [m_img, Hout*Wout] (lane-dense N).
        # TODO(synk): replace kron with two separable matmuls at real
        # resolutions (kron is O(Hout*Wout*ho*wo) and would blow v7x VMEM).
        u_h = _linear_resize_matrix(img_height, self.ho)
        u_w = _linear_resize_matrix(img_width, self.wo)
        self.u_t = jnp.asarray(np.kron(u_h, u_w).T, dtype=jnp.bfloat16)  # [ho*wo, Hout*Wout]

        self._forward = jax.jit(self._forward_impl)

    def _forward_impl(self, x_nchw):
        n, c, h, w = x_nchw.shape
        assert c == self.cin
        assert (h, w) == (self.img_height, self.img_width)
        nk, width, cp = self.num_keypoints, self.width, self.cp
        ho, wo = self.ho, self.wo
        hb, wb = ho + 1, wo + 1
        m_img = ho * wo
        s_out = self.img_height * self.img_width

        # Fold batch into the matmul M dimension: smallest batch group whose
        # folded M fills the MXU (>=128 rows).
        bpg = n
        for d in range(1, n + 1):
            if n % d == 0 and d * m_img >= 128:
                bpg = d
                break
        n_groups = n // bpg

        # NCHW -> NHWC, halo pad, space-to-depth (2x2), channel pad 12->16,
        # bf16: pure glue on the tiny input so the stride-2 stem needs no
        # strided slicing (and no casts) in-kernel.
        x = jnp.transpose(x_nchw.astype(jnp.float32), (0, 2, 3, 1))
        xp = jnp.pad(x, ((0, 0), (1, 1), (1, 1), (0, 0)))
        x_s2d = (xp.reshape(n, hb, 2, wb, 2, c)
                   .transpose(0, 1, 3, 2, 4, 5)
                   .reshape(n, hb, wb, 4 * c))
        x_s2d = jnp.pad(x_s2d, ((0, 0), (0, 0), (0, 0), (0, cp - 4 * c)))
        x_s2d = x_s2d.astype(jnp.bfloat16)

        kernel = functools.partial(_recenternet_fused_kernel,
                                   bpg=bpg, ho=ho, wo=wo, width=width, nk=nk)
        out_flat = pl.pallas_call(
            kernel,
            out_shape=jax.ShapeDtypeStruct((n, nk, s_out), jnp.float32),
            grid=(n_groups,),
            in_specs=[
                pl.BlockSpec((bpg, hb, wb, cp), lambda i: (i, 0, 0, 0)),
                pl.BlockSpec((4 * cp, width), lambda i: (0, 0)),
                pl.BlockSpec((1, width), lambda i: (0, 0)),
                pl.BlockSpec((9 * width, width), lambda i: (0, 0)),
                pl.BlockSpec((1, width), lambda i: (0, 0)),
                pl.BlockSpec((9 * width, width), lambda i: (0, 0)),
                pl.BlockSpec((1, width), lambda i: (0, 0)),
                pl.BlockSpec((width, nk), lambda i: (0, 0)),
                pl.BlockSpec((1, nk), lambda i: (0, 0)),
                pl.BlockSpec((m_img, s_out), lambda i: (0, 0)),
            ],
            out_specs=pl.BlockSpec((bpg, nk, s_out), lambda i: (i, 0, 0)),
            scratch_shapes=[pltpu.VMEM((bpg, ho + 2, wo + 2, width), jnp.float32)],
            compiler_params=pltpu.CompilerParams(
                dimension_semantics=("parallel",),
                vmem_limit_bytes=32 * 1024 * 1024,
            ),
        )(x_s2d, self.w_stem_fused, self.b_stem_row,
          self.w1_fused, self.b1_row, self.w2_fused, self.b2_row,
          self.w_head_kp, self.b_head_kp, self.u_t)

        # (N, nk, Hout*Wout) -> NCHW, no transpose needed.
        return out_flat.reshape(n, nk, self.img_height, self.img_width)

    def __call__(self, x_nchw):
        return self._forward(x_nchw)


if __name__ == "__main__":
    key = jax.random.PRNGKey(0)
    batch, channels, height, width_img = 2, 3, 16, 16
    x = jax.random.normal(key, (batch, channels, height, width_img), jnp.float32)

    model = RecenterNetPallas(num_keypoints=1, img_height=height,
                              img_width=width_img, seed=0)
    out = model(x)
    out = jax.block_until_ready(out)

    assert out.shape == (batch, 1, height, width_img), out.shape
    assert bool(jnp.all(jnp.isfinite(out)))
    assert bool(jnp.all((out >= 0.0) & (out <= 1.0)))
    print("KERNEL_OK")
</pallas_src>

<mosaic_0001>
module attributes {stable_mosaic.version = 11 : i64} {
  func.func @_recenternet_fused_kernel(%arg0: i32, %arg1: memref<2x9x9x16xbf16, #tpu.memory_space<vmem>>, %arg2: memref<64x16xbf16, #tpu.memory_space<vmem>>, %arg3: memref<1x16xf32, #tpu.memory_space<vmem>>, %arg4: memref<144x16xbf16, #tpu.memory_space<vmem>>, %arg5: memref<1x16xf32, #tpu.memory_space<vmem>>, %arg6: memref<144x16xbf16, #tpu.memory_space<vmem>>, %arg7: memref<1x16xf32, #tpu.memory_space<vmem>>, %arg8: memref<16x1xbf16, #tpu.memory_space<vmem>>, %arg9: memref<1x1xf32, #tpu.memory_space<vmem>>, %arg10: memref<64x256xbf16, #tpu.memory_space<vmem>>, %arg11: memref<2x1x256xf32, #tpu.memory_space<vmem>>, %arg12: memref<2x10x10x16xf32, #tpu.memory_space<vmem>>) attributes {dimension_semantics = [#tpu.dimension_semantics<parallel>], iteration_bounds = array<i64: 1>, scalar_prefetch = 0 : i64, scratch_operands = 1 : i64, tpu.core_type = #tpu.core_type<tc>, window_params = [{transform_indices = @transform_0, window_bounds = array<i64: 2, 9, 9, 16>}, {pipeline_mode = #tpu.pipeline_mode<synchronous>, transform_indices = @transform_1, window_bounds = array<i64: 64, 16>}, {pipeline_mode = #tpu.pipeline_mode<synchronous>, transform_indices = @transform_2, window_bounds = array<i64: 1, 16>}, {pipeline_mode = #tpu.pipeline_mode<synchronous>, transform_indices = @transform_3, window_bounds = array<i64: 144, 16>}, {pipeline_mode = #tpu.pipeline_mode<synchronous>, transform_indices = @transform_4, window_bounds = array<i64: 1, 16>}, {pipeline_mode = #tpu.pipeline_mode<synchronous>, transform_indices = @transform_5, window_bounds = array<i64: 144, 16>}, {pipeline_mode = #tpu.pipeline_mode<synchronous>, transform_indices = @transform_6, window_bounds = array<i64: 1, 16>}, {pipeline_mode = #tpu.pipeline_mode<synchronous>, transform_indices = @transform_7, window_bounds = array<i64: 16, 1>}, {pipeline_mode = #tpu.pipeline_mode<synchronous>, transform_indices = @transform_8, window_bounds = array<i64: 1, 1>}, {pipeline_mode = #tpu.pipeline_mode<synchronous>, transform_indices = @transform_9, window_bounds = array<i64: 64, 256>}, {transform_indices = @transform_10, window_bounds = array<i64: 2, 1, 256>}]} {
    %c0 = arith.constant 0 : index
    %c0_0 = arith.constant 0 : index
    %c0_1 = arith.constant 0 : index
    %c0_2 = arith.constant 0 : index
    %0 = vector.load %arg1[%c0, %c0_0, %c0_1, %c0_2] : memref<2x9x9x16xbf16, #tpu.memory_space<vmem>>, vector<2x9x9x16xbf16>
    %1 = vector.extract_strided_slice %0 {offsets = [0, 0, 0, 0], sizes = [2, 8, 8, 16], strides = [1, 1, 1, 1]} : vector<2x9x9x16xbf16> to vector<2x8x8x16xbf16>
    %2 = vector.extract_strided_slice %0 {offsets = [0, 0, 1, 0], sizes = [2, 8, 8, 16], strides = [1, 1, 1, 1]} : vector<2x9x9x16xbf16> to vector<2x8x8x16xbf16>
    %3 = vector.extract_strided_slice %0 {offsets = [0, 1, 0, 0], sizes = [2, 8, 8, 16], strides = [1, 1, 1, 1]} : vector<2x9x9x16xbf16> to vector<2x8x8x16xbf16>
    %4 = vector.extract_strided_slice %0 {offsets = [0, 1, 1, 0], sizes = [2, 8, 8, 16], strides = [1, 1, 1, 1]} : vector<2x9x9x16xbf16> to vector<2x8x8x16xbf16>
    %5 = tpu.concatenate %1, %2, %3, %4 in 3 : vector<2x8x8x16xbf16>, vector<2x8x8x16xbf16>, vector<2x8x8x16xbf16>, vector<2x8x8x16xbf16> -> vector<2x8x8x64xbf16>
    %6 = vector.shape_cast %5 : vector<2x8x8x64xbf16> to vector<128x64xbf16>
    %c0_3 = arith.constant 0 : index
    %c0_4 = arith.constant 0 : index
    %7 = vector.load %arg2[%c0_3, %c0_4] : memref<64x16xbf16, #tpu.memory_space<vmem>>, vector<64x16xbf16>
    %cst = arith.constant dense<0.000000e+00> : vector<128x16xf32>
    %8 = tpu.matmul %6, %7, %cst {dimension_numbers = #tpu.dot_dimension_numbers<[1], [0], [0], [1], [0, 0, 1, 1], [], []>} : vector<128x64xbf16>, vector<64x16xbf16>, vector<128x16xf32> -> vector<128x16xf32>
    %c0_5 = arith.constant 0 : index
    %c0_6 = arith.constant 0 : index
    %9 = vector.load %arg3[%c0_5, %c0_6] : memref<1x16xf32, #tpu.memory_space<vmem>>, vector<1x16xf32>
    %10 = vector.broadcast %9 : vector<1x16xf32> to vector<128x16xf32>
    %11 = arith.addf %8, %10 : vector<128x16xf32>
    %cst_7 = arith.constant 0.000000e+00 : f32
    %12 = vector.broadcast %cst_7 : f32 to vector<128x16xf32>
    %13 = arith.maximumf %11, %12 : vector<128x16xf32>
    %cst_8 = arith.constant 0.000000e+00 : f32
    %14 = vector.broadcast %cst_8 : f32 to vector<2x1x10x16xf32>
    %cst_9 = arith.constant 0.000000e+00 : f32
    %15 = vector.broadcast %cst_9 : f32 to vector<2x10x1x16xf32>
    %c0_10 = arith.constant 0 : index
    %c0_11 = arith.constant 0 : index
    %c0_12 = arith.constant 0 : index
    %c0_13 = arith.constant 0 : index
    %16 = vector.load %arg12[%c0_10, %c0_11, %c0_12, %c0_13] : memref<2x10x10x16xf32, #tpu.memory_space<vmem>>, vector<2x1x10x16xf32>
    tpu.vector_store %arg12[%c0_10, %c0_11, %c0_12, %c0_13], %14 {strides = array<i32>} : memref<2x10x10x16xf32, #tpu.memory_space<vmem>>, vector<2x1x10x16xf32>,
    %c0_14 = arith.constant 0 : index
    %c9 = arith.constant 9 : index
    %c0_15 = arith.constant 0 : index
    %c0_16 = arith.constant 0 : index
    %17 = vector.load %arg12[%c0_14, %c9, %c0_15, %c0_16] : memref<2x10x10x16xf32, #tpu.memory_space<vmem>>, vector<2x1x10x16xf32>
    tpu.vector_store %arg12[%c0_14, %c9, %c0_15, %c0_16], %14 {strides = array<i32>} : memref<2x10x10x16xf32, #tpu.memory_space<vmem>>, vector<2x1x10x16xf32>,
    %c0_17 = arith.constant 0 : index
    %c0_18 = arith.constant 0 : index
    %c0_19 = arith.constant 0 : index
    %c0_20 = arith.constant 0 : index
    %18 = vector.load %arg12[%c0_17, %c0_18, %c0_19, %c0_20] : memref<2x10x10x16xf32, #tpu.memory_space<vmem>>, vector<2x10x1x16xf32>
    tpu.vector_store %arg12[%c0_17, %c0_18, %c0_19, %c0_20], %15 {strides = array<i32>} : memref<2x10x10x16xf32, #tpu.memory_space<vmem>>, vector<2x10x1x16xf32>,
    %c0_21 = arith.constant 0 : index
    %c0_22 = arith.constant 0 : index
    %c9_23 = arith.constant 9 : index
    %c0_24 = arith.constant 0 : index
    %19 = vector.load %arg12[%c0_21, %c0_22, %c9_23, %c0_24] : memref<2x10x10x16xf32, #tpu.memory_space<vmem>>, vector<2x10x1x16xf32>
    tpu.vector_store %arg12[%c0_21, %c0_22, %c9_23, %c0_24], %15 {strides = array<i32>} : memref<2x10x10x16xf32, #tpu.memory_space<vmem>>, vector<2x10x1x16xf32>,
    %20 = vector.shape_cast %13 : vector<128x16xf32> to vector<2x8x8x16xf32>
    %c0_25 = arith.constant 0 : index
    %c1 = arith.constant 1 : index
    %c1_26 = arith.constant 1 : index
    %c0_27 = arith.constant 0 : index
    %21 = vector.load %arg12[%c0_25, %c1, %c1_26, %c0_27] : memref<2x10x10x16xf32, #tpu.memory_space<vmem>>, vector<2x8x8x16xf32>
    tpu.vector_store %arg12[%c0_25, %c1, %c1_26, %c0_27], %20 {strides = array<i32>} : memref<2x10x10x16xf32, #tpu.memory_space<vmem>>, vector<2x8x8x16xf32>,
    %c0_28 = arith.constant 0 : index
    %c0_29 = arith.constant 0 : index
    %c0_30 = arith.constant 0 : index
    %c0_31 = arith.constant 0 : index
    %22 = vector.load %arg12[%c0_28, %c0_29, %c0_30, %c0_31] : memref<2x10x10x16xf32, #tpu.memory_space<vmem>>, vector<2x10x10x16xf32>
    %23 = vector.extract_strided_slice %22 {offsets = [0, 0, 0, 0], sizes = [2, 8, 8, 16], strides = [1, 1, 1, 1]} : vector<2x10x10x16xf32> to vector<2x8x8x16xf32>
    %24 = vector.extract_strided_slice %22 {offsets = [0, 0, 1, 0], sizes = [2, 8, 8, 16], strides = [1, 1, 1, 1]} : vector<2x10x10x16xf32> to vector<2x8x8x16xf32>
    %25 = vector.extract_strided_slice %22 {offsets = [0, 0, 2, 0], sizes = [2, 8, 8, 16], strides = [1, 1, 1, 1]} : vector<2x10x10x16xf32> to vector<2x8x8x16xf32>
    %26 = vector.extract_strided_slice %22 {offsets = [0, 1, 0, 0], sizes = [2, 8, 8, 16], strides = [1, 1, 1, 1]} : vector<2x10x10x16xf32> to vector<2x8x8x16xf32>
    %27 = vector.extract_strided_slice %22 {offsets = [0, 1, 1, 0], sizes = [2, 8, 8, 16], strides = [1, 1, 1, 1]} : vector<2x10x10x16xf32> to vector<2x8x8x16xf32>
    %28 = vector.extract_strided_slice %22 {offsets = [0, 1, 2, 0], sizes = [2, 8, 8, 16], strides = [1, 1, 1, 1]} : vector<2x10x10x16xf32> to vector<2x8x8x16xf32>
    %29 = vector.extract_strided_slice %22 {offsets = [0, 2, 0, 0], sizes = [2, 8, 8, 16], strides = [1, 1, 1, 1]} : vector<2x10x10x16xf32> to vector<2x8x8x16xf32>
    %30 = vector.extract_strided_slice %22 {offsets = [0, 2, 1, 0], sizes = [2, 8, 8, 16], strides = [1, 1, 1, 1]} : vector<2x10x10x16xf32> to vector<2x8x8x16xf32>
    %31 = vector.extract_strided_slice %22 {offsets = [0, 2, 2, 0], sizes = [2, 8, 8, 16], strides = [1, 1, 1, 1]} : vector<2x10x10x16xf32> to vector<2x8x8x16xf32>
    %32 = tpu.concatenate %23, %24, %25, %26, %27, %28, %29, %30, %31 in 3 : vector<2x8x8x16xf32>, vector<2x8x8x16xf32>, vector<2x8x8x16xf32>, vector<2x8x8x16xf32>, vector<2x8x8x16xf32>, vector<2x8x8x16xf32>, vector<2x8x8x16xf32>, vector<2x8x8x16xf32>, vector<2x8x8x16xf32> -> vector<2x8x8x144xf32>
    %33 = vector.shape_cast %32 : vector<2x8x8x144xf32> to vector<128x144xf32>
    %34 = arith.truncf %33 : vector<128x144xf32> to vector<128x144xbf16>
    %c0_32 = arith.constant 0 : index
    %c0_33 = arith.constant 0 : index
    %35 = vector.load %arg4[%c0_32, %c0_33] : memref<144x16xbf16, #tpu.memory_space<vmem>>, vector<144x16xbf16>
    %cst_34 = arith.constant dense<0.000000e+00> : vector<128x16xf32>
    %36 = tpu.matmul %34, %35, %cst_34 {dimension_numbers = #tpu.dot_dimension_numbers<[1], [0], [0], [1], [0, 0, 1, 1], [], []>} : vector<128x144xbf16>, vector<144x16xbf16>, vector<128x16xf32> -> vector<128x16xf32>
    %c0_35 = arith.constant 0 : index
    %c0_36 = arith.constant 0 : index
    %37 = vector.load %arg5[%c0_35, %c0_36] : memref<1x16xf32, #tpu.memory_space<vmem>>, vector<1x16xf32>
    %38 = vector.broadcast %37 : vector<1x16xf32> to vector<128x16xf32>
    %39 = arith.addf %36, %38 : vector<128x16xf32>
    %cst_37 = arith.constant 0.000000e+00 : f32
    %40 = vector.broadcast %cst_37 : f32 to vector<128x16xf32>
    %41 = arith.maximumf %39, %40 : vector<128x16xf32>
    %42 = vector.shape_cast %41 : vector<128x16xf32> to vector<2x8x8x16xf32>
    %c0_38 = arith.constant 0 : index
    %c1_39 = arith.constant 1 : index
    %c1_40 = arith.constant 1 : index
    %c0_41 = arith.constant 0 : index
    %43 = vector.load %arg12[%c0_38, %c1_39, %c1_40, %c0_41] : memref<2x10x10x16xf32, #tpu.memory_space<vmem>>, vector<2x8x8x16xf32>
    tpu.vector_store %arg12[%c0_38, %c1_39, %c1_40, %c0_41], %42 {strides = array<i32>} : memref<2x10x10x16xf32, #tpu.memory_space<vmem>>, vector<2x8x8x16xf32>,
    %c0_42 = arith.constant 0 : index
    %c0_43 = arith.constant 0 : index
    %c0_44 = arith.constant 0 : index
    %c0_45 = arith.constant 0 : index
    %44 = vector.load %arg12[%c0_42, %c0_43, %c0_44, %c0_45] : memref<2x10x10x16xf32, #tpu.memory_space<vmem>>, vector<2x10x10x16xf32>
    %45 = vector.extract_strided_slice %44 {offsets = [0, 0, 0, 0], sizes = [2, 8, 8, 16], strides = [1, 1, 1, 1]} : vector<2x10x10x16xf32> to vector<2x8x8x16xf32>
    %46 = vector.extract_strided_slice %44 {offsets = [0, 0, 1, 0], sizes = [2, 8, 8, 16], strides = [1, 1, 1, 1]} : vector<2x10x10x16xf32> to vector<2x8x8x16xf32>
    %47 = vector.extract_strided_slice %44 {offsets = [0, 0, 2, 0], sizes = [2, 8, 8, 16], strides = [1, 1, 1, 1]} : vector<2x10x10x16xf32> to vector<2x8x8x16xf32>
    %48 = vector.extract_strided_slice %44 {offsets = [0, 1, 0, 0], sizes = [2, 8, 8, 16], strides = [1, 1, 1, 1]} : vector<2x10x10x16xf32> to vector<2x8x8x16xf32>
    %49 = vector.extract_strided_slice %44 {offsets = [0, 1, 1, 0], sizes = [2, 8, 8, 16], strides = [1, 1, 1, 1]} : vector<2x10x10x16xf32> to vector<2x8x8x16xf32>
    %50 = vector.extract_strided_slice %44 {offsets = [0, 1, 2, 0], sizes = [2, 8, 8, 16], strides = [1, 1, 1, 1]} : vector<2x10x10x16xf32> to vector<2x8x8x16xf32>
    %51 = vector.extract_strided_slice %44 {offsets = [0, 2, 0, 0], sizes = [2, 8, 8, 16], strides = [1, 1, 1, 1]} : vector<2x10x10x16xf32> to vector<2x8x8x16xf32>
    %52 = vector.extract_strided_slice %44 {offsets = [0, 2, 1, 0], sizes = [2, 8, 8, 16], strides = [1, 1, 1, 1]} : vector<2x10x10x16xf32> to vector<2x8x8x16xf32>
    %53 = vector.extract_strided_slice %44 {offsets = [0, 2, 2, 0], sizes = [2, 8, 8, 16], strides = [1, 1, 1, 1]} : vector<2x10x10x16xf32> to vector<2x8x8x16xf32>
    %54 = tpu.concatenate %45, %46, %47, %48, %49, %50, %51, %52, %53 in 3 : vector<2x8x8x16xf32>, vector<2x8x8x16xf32>, vector<2x8x8x16xf32>, vector<2x8x8x16xf32>, vector<2x8x8x16xf32>, vector<2x8x8x16xf32>, vector<2x8x8x16xf32>, vector<2x8x8x16xf32>, vector<2x8x8x16xf32> -> vector<2x8x8x144xf32>
    %55 = vector.shape_cast %54 : vector<2x8x8x144xf32> to vector<128x144xf32>
    %56 = arith.truncf %55 : vector<128x144xf32> to vector<128x144xbf16>
    %c0_46 = arith.constant 0 : index
    %c0_47 = arith.constant 0 : index
    %57 = vector.load %arg6[%c0_46, %c0_47] : memref<144x16xbf16, #tpu.memory_space<vmem>>, vector<144x16xbf16>
    %cst_48 = arith.constant dense<0.000000e+00> : vector<128x16xf32>
    %58 = tpu.matmul %56, %57, %cst_48 {dimension_numbers = #tpu.dot_dimension_numbers<[1], [0], [0], [1], [0, 0, 1, 1], [], []>} : vector<128x144xbf16>, vector<144x16xbf16>, vector<128x16xf32> -> vector<128x16xf32>
    %c0_49 = arith.constant 0 : index
    %c0_50 = arith.constant 0 : index
    %59 = vector.load %arg7[%c0_49, %c0_50] : memref<1x16xf32, #tpu.memory_space<vmem>>, vector<1x16xf32>
    %60 = vector.broadcast %59 : vector<1x16xf32> to vector<128x16xf32>
    %61 = arith.addf %58, %60 : vector<128x16xf32>
    %62 = arith.addf %61, %13 : vector<128x16xf32>
    %cst_51 = arith.constant 0.000000e+00 : f32
    %63 = vector.broadcast %cst_51 : f32 to vector<128x16xf32>
    %64 = arith.maximumf %62, %63 : vector<128x16xf32>
    %65 = arith.truncf %64 : vector<128x16xf32> to vector<128x16xbf16>
    %c0_52 = arith.constant 0 : index
    %c0_53 = arith.constant 0 : index
    %66 = vector.load %arg8[%c0_52, %c0_53] : memref<16x1xbf16, #tpu.memory_space<vmem>>, vector<16x1xbf16>
    %cst_54 = arith.constant dense<0.000000e+00> : vector<128x1xf32>
    %67 = tpu.matmul %65, %66, %cst_54 {dimension_numbers = #tpu.dot_dimension_numbers<[1], [0], [0], [1], [0, 0, 1, 1], [], []>} : vector<128x16xbf16>, vector<16x1xbf16>, vector<128x1xf32> -> vector<128x1xf32>
    %c0_55 = arith.constant 0 : index
    %c0_56 = arith.constant 0 : index
    %68 = vector.load %arg9[%c0_55, %c0_56] : memref<1x1xf32, #tpu.memory_space<vmem>>, vector<1x1xf32>
    %69 = vector.broadcast %68 : vector<1x1xf32> to vector<128x1xf32>
    %70 = arith.addf %67, %69 : vector<128x1xf32>
    %71 = vector.shape_cast %70 : vector<128x1xf32> to vector<2x64xf32>
    %72 = arith.truncf %71 : vector<2x64xf32> to vector<2x64xbf16>
    %c0_57 = arith.constant 0 : index
    %c0_58 = arith.constant 0 : index
    %73 = vector.load %arg10[%c0_57, %c0_58] : memref<64x256xbf16, #tpu.memory_space<vmem>>, vector<64x256xbf16>
    %cst_59 = arith.constant dense<0.000000e+00> : vector<2x256xf32>
    %74 = tpu.matmul %72, %73, %cst_59 {dimension_numbers = #tpu.dot_dimension_numbers<[1], [0], [0], [1], [0, 0, 1, 1], [], []>} : vector<2x64xbf16>, vector<64x256xbf16>, vector<2x256xf32> -> vector<2x256xf32>
    %75 = arith.negf %74 : vector<2x256xf32>
    %76 = math.exp %75 : vector<2x256xf32>
    %cst_60 = arith.constant 1.000000e+00 : f32
    %77 = vector.broadcast %cst_60 : f32 to vector<2x256xf32>
    %78 = arith.addf %77, %76 : vector<2x256xf32>
    %79 = arith.divf %77, %78 : vector<2x256xf32>
    %80 = vector.shape_cast %79 : vector<2x256xf32> to vector<2x1x256xf32>
    %c0_61 = arith.constant 0 : index
    %c0_62 = arith.constant 0 : index
    %c0_63 = arith.constant 0 : index
    %81 = vector.load %arg11[%c0_61, %c0_62, %c0_63] : memref<2x1x256xf32, #tpu.memory_space<vmem>>, vector<2x1x256xf32>
    tpu.vector_store %arg11[%c0_61, %c0_62, %c0_63], %80 {strides = array<i32>} : memref<2x1x256xf32, #tpu.memory_space<vmem>>, vector<2x1x256xf32>,
    return
  }
  func.func @transform_0(%arg0: i32) -> (i32, i32, i32, i32) {
    %c0_i32 = arith.constant 0 : i32
    %c0_i32_0 = arith.constant 0 : i32
    %c0_i32_1 = arith.constant 0 : i32
    %c0_i32_2 = arith.constant 0 : i32
    return %arg0, %c0_i32, %c0_i32_0, %c0_i32_1 : i32, i32, i32, i32
  }
  func.func @transform_1(%arg0: i32) -> (i32, i32) {
    %c0_i32 = arith.constant 0 : i32
    %c0_i32_0 = arith.constant 0 : i32
    %c0_i32_1 = arith.constant 0 : i32
    return %c0_i32, %c0_i32_0 : i32, i32
  }
  func.func @transform_2(%arg0: i32) -> (i32, i32) {
    %c0_i32 = arith.constant 0 : i32
    %c0_i32_0 = arith.constant 0 : i32
    %c0_i32_1 = arith.constant 0 : i32
    return %c0_i32, %c0_i32_0 : i32, i32
  }
  func.func @transform_3(%arg0: i32) -> (i32, i32) {
    %c0_i32 = arith.constant 0 : i32
    %c0_i32_0 = arith.constant 0 : i32
    %c0_i32_1 = arith.constant 0 : i32
    return %c0_i32, %c0_i32_0 : i32, i32
  }
  func.func @transform_4(%arg0: i32) -> (i32, i32) {
    %c0_i32 = arith.constant 0 : i32
    %c0_i32_0 = arith.constant 0 : i32
    %c0_i32_1 = arith.constant 0 : i32
    return %c0_i32, %c0_i32_0 : i32, i32
  }
  func.func @transform_5(%arg0: i32) -> (i32, i32) {
    %c0_i32 = arith.constant 0 : i32
    %c0_i32_0 = arith.constant 0 : i32
    %c0_i32_1 = arith.constant 0 : i32
    return %c0_i32, %c0_i32_0 : i32, i32
  }
  func.func @transform_6(%arg0: i32) -> (i32, i32) {
    %c0_i32 = arith.constant 0 : i32
    %c0_i32_0 = arith.constant 0 : i32
    %c0_i32_1 = arith.constant 0 : i32
    return %c0_i32, %c0_i32_0 : i32, i32
  }
  func.func @transform_7(%arg0: i32) -> (i32, i32) {
    %c0_i32 = arith.constant 0 : i32
    %c0_i32_0 = arith.constant 0 : i32
    %c0_i32_1 = arith.constant 0 : i32
    return %c0_i32, %c0_i32_0 : i32, i32
  }
  func.func @transform_8(%arg0: i32) -> (i32, i32) {
    %c0_i32 = arith.constant 0 : i32
    %c0_i32_0 = arith.constant 0 : i32
    %c0_i32_1 = arith.constant 0 : i32
    return %c0_i32, %c0_i32_0 : i32, i32
  }
  func.func @transform_9(%arg0: i32) -> (i32, i32) {
    %c0_i32 = arith.constant 0 : i32
    %c0_i32_0 = arith.constant 0 : i32
    %c0_i32_1 = arith.constant 0 : i32
    return %c0_i32, %c0_i32_0 : i32, i32
  }
  func.func @transform_10(%arg0: i32) -> (i32, i32, i32) {
    %c0_i32 = arith.constant 0 : i32
    %c0_i32_0 = arith.constant 0 : i32
    %c0_i32_1 = arith.constant 0 : i32
    return %arg0, %c0_i32, %c0_i32_0 : i32, i32, i32
  }
}

</mosaic_0001>

<llo_original>
// kernel: _forward_impl.1
$region0: #{_forward_impl.1}
  #allocation0 [shape = 'u32[]', space=smem, size = 0x4, offset = 0x4, fixed_abs, tag = 'smem constant byte address 0x4 - core index']
  #allocation1 [shape = 'u32[72,128]{1,0:T(1,128)}', space=vmem, size = 0x9000, scoped, tag = 'internal scratch']
  #allocation2 [shape = 'f32[2,10,10,16]{3,2,1,0:T(8,128)}', space=vmem, size = 0x28000, scoped, tag = 'scratch operand']
  #allocation3 [shape = 'f32[1,1]{1,0:T(1,128)S(1)}', space=vmem, size = 0x200, scoped, tag = 'scoped memory for _forward_impl.1']
  %s0 = inlined_call_operand.vmem [shape: bf16[2,9,9,16], index: 0, kind: input, shape index: {}]
  %s1 = inlined_call_operand.vmem [shape: bf16[64,16], index: 1, kind: input, shape index: {}]
  %s2 = inlined_call_operand.vmem [shape: f32[1,16], index: 2, kind: input, shape index: {}, may-alias: {2,4,6}]
  %s3 = inlined_call_operand.vmem [shape: bf16[144,16], index: 3, kind: input, shape index: {}]
  %s4 = inlined_call_operand.vmem [shape: f32[1,16], index: 4, kind: input, shape index: {}, may-alias: {2,4,6}]
  %s5 = inlined_call_operand.vmem [shape: bf16[144,16], index: 5, kind: input, shape index: {}]
  %s6 = inlined_call_operand.vmem [shape: f32[1,16], index: 6, kind: input, shape index: {}, may-alias: {2,4,6}]
  %s7 = inlined_call_operand.vmem [shape: bf16[16,1], index: 7, kind: input, shape index: {}]
  %s8 = inlined_call_operand.<no memory space> [shape: f32[1,1], index: 8, kind: input, shape index: {}]
  %s9 = inlined_call_operand.vmem [shape: bf16[64,256], index: 9, kind: input, shape index: {}]
  %s10 = inlined_call_operand.vmem [shape: f32[2,1,256], index: 10, kind: output, shape index: {}]
  %s11 = sld [smem:[#allocation0]]
  $region50: #{_forward_impl.1} parent=0
    _
  %s13 = ssub.s32 1, %s11
  %s14 = scalar_select 0, %s13, %s11
  %v15 = vstv %s8
  %16 = vst [vmem:[#allocation3] sm:$0x1] %v15
  // Predicated region
  $region2: #{_forward_impl.1} parent=0 // pred_check
    _
  $region3: #{_forward_impl.1} parent=0 // pred_check_branch
    %18 = sbr.rel (0) target = $region5
  $region4: #{_forward_impl.1} parent=0 // pred_region
    _
  $region5: #{_forward_impl.1} parent=0 // pred_fallthru
    _
  // Predicated region
  $region6: #{_forward_impl.1} parent=0 // pred_check
    _
  $region7: #{_forward_impl.1} parent=0 // pred_check_branch
    %20 = sbr.rel (0) target = $region9
  $region8: #{_forward_impl.1} parent=0 // pred_region
    _
  $region9: #{_forward_impl.1} parent=0 // pred_fallthru
    _
  // Predicated region
  $region10: #{_forward_impl.1} parent=0 // pred_check
    _
  $region11: #{_forward_impl.1} parent=0 // pred_check_branch
    %22 = sbr.rel (0) target = $region13
  $region12: #{_forward_impl.1} parent=0 // pred_region
    _
  $region13: #{_forward_impl.1} parent=0 // pred_fallthru
    _
  // Predicated region
  $region14: #{_forward_impl.1} parent=0 // pred_check
    _
  $region15: #{_forward_impl.1} parent=0 // pred_check_branch
    %24 = sbr.rel (0) target = $region17
  $region16: #{_forward_impl.1} parent=0 // pred_region
    _
  $region17: #{_forward_impl.1} parent=0 // pred_fallthru
    _
  // Predicated region
  $region18: #{_forward_impl.1} parent=0 // pred_check
    _
  $region19: #{_forward_impl.1} parent=0 // pred_check_branch
    %26 = sbr.rel (0) target = $region21
  $region20: #{_forward_impl.1} parent=0 // pred_region
    _
  $region21: #{_forward_impl.1} parent=0 // pred_fallthru
    _
  // Predicated region
  $region22: #{_forward_impl.1} parent=0 // pred_check
    _
  $region23: #{_forward_impl.1} parent=0 // pred_check_branch
    %28 = sbr.rel (0) target = $region25
  $region24: #{_forward_impl.1} parent=0 // pred_region
    _
  $region25: #{_forward_impl.1} parent=0 // pred_fallthru
    _
  // Predicated region
  $region26: #{_forward_impl.1} parent=0 // pred_check
    _
  $region27: #{_forward_impl.1} parent=0 // pred_check_branch
    %30 = sbr.rel (0) target = $region29
  $region28: #{_forward_impl.1} parent=0 // pred_region
    _
  $region29: #{_forward_impl.1} parent=0 // pred_fallthru
    _
  // Predicated region
  $region30: #{_forward_impl.1} parent=0 // pred_check
    _
  $region31: #{_forward_impl.1} parent=0 // pred_check_branch
    %32 = sbr.rel (0) target = $region33
  $region32: #{_forward_impl.1} parent=0 // pred_region
    _
  $region33: #{_forward_impl.1} parent=0 // pred_fallthru
    _
  // Predicated region
  $region34: #{_forward_impl.1} parent=0 // pred_check
    _
  $region35: #{_forward_impl.1} parent=0 // pred_check_branch
    %34 = sbr.rel (0) target = $region37
  $region36: #{_forward_impl.1} parent=0 // pred_region
    _
  $region37: #{_forward_impl.1} parent=0 // pred_fallthru
    _
  // Predicated region
  $region38: #{_forward_impl.1} parent=0 // pred_check
    _
  $region39: #{_forward_impl.1} parent=0 // pred_check_branch
    %36 = sbr.rel (0) target = $region41
  $region40: #{_forward_impl.1} parent=0 // pred_region
    _
  $region41: #{_forward_impl.1} parent=0 // pred_fallthru
    _
  %v38 = vld [vmem:[%s0] sm:$0xf]
  %v39 = vld [vmem:[%s0 + $0x4] sm:$0x1]
  %v40 = vld [vmem:[%s0 + $0x8] sm:$0xf]
  %v41 = vld [vmem:[%s0 + $0xc] sm:$0x1]
  %v42 = vld [vmem:[%s0 + $0x10] sm:$0xf]
  %v43 = vld [vmem:[%s0 + $0x14] sm:$0x1]
  %v44 = vld [vmem:[%s0 + $0x18] sm:$0xf]
  %v45 = vld [vmem:[%s0 + $0x1c] sm:$0x1]
  %v46 = vld [vmem:[%s0 + $0x20] sm:$0xf]
  %v47 = vld [vmem:[%s0 + $0x24] sm:$0x1]
  %v48 = vld [vmem:[%s0 + $0x28] sm:$0xf]
  %v49 = vld [vmem:[%s0 + $0x2c] sm:$0x1]
  %v50 = vld [vmem:[%s0 + $0x30] sm:$0xf]
  %v51 = vld [vmem:[%s0 + $0x34] sm:$0x1]
  %v52 = vld [vmem:[%s0 + $0x38] sm:$0xf]
  %v53 = vld [vmem:[%s0 + $0x3c] sm:$0x1]
  %v54 = vld [vmem:[%s0 + $0x40] sm:$0xf]
  %v55 = vld [vmem:[%s0 + $0x44] sm:$0x1]
  %v56 = vld [vmem:[%s0 + $0x48] sm:$0xf]
  %v57 = vld [vmem:[%s0 + $0x4c] sm:$0x1]
  %v58 = vld [vmem:[%s0 + $0x50] sm:$0xf]
  %v59 = vld [vmem:[%s0 + $0x54] sm:$0x1]
  %v60 = vld [vmem:[%s0 + $0x58] sm:$0xf]
  %v61 = vld [vmem:[%s0 + $0x5c] sm:$0x1]
  %v62 = vld [vmem:[%s0 + $0x60] sm:$0xf]
  %v63 = vld [vmem:[%s0 + $0x64] sm:$0x1]
  %v64 = vld [vmem:[%s0 + $0x68] sm:$0xf]
  %v65 = vld [vmem:[%s0 + $0x6c] sm:$0x1]
  %v66 = vld [vmem:[%s0 + $0x70] sm:$0xf]
  %v67 = vld [vmem:[%s0 + $0x74] sm:$0x1]
  %v68 = vld [vmem:[%s0 + $0x78] sm:$0xf]
  %v69 = vld [vmem:[%s0 + $0x7c] sm:$0x1]
  %v70 = vld [vmem:[%s0 + $0x80] sm:$0xf]
  %v71 = vld [vmem:[%s0 + $0x84] sm:$0x1]
  %v72 = vld [vmem:[%s0 + $0x88] sm:$0xf]
  %v73 = vld [vmem:[%s0 + $0x8c] sm:$0x1]
  %v106 = vunpack.c.l.b16 %v38
  %v107 = vunpack.c.l.b16 %v39
  %v108 = vunpack.c.l.b16 %v40
  %v109 = vunpack.c.l.b16 %v41
  %v110 = vunpack.c.l.b16 %v42
  %v111 = vunpack.c.l.b16 %v43
  %v112 = vunpack.c.l.b16 %v44
  %v113 = vunpack.c.l.b16 %v45
  %v114 = vunpack.c.l.b16 %v46
  %v115 = vunpack.c.l.b16 %v47
  %v116 = vunpack.c.l.b16 %v48
  %v117 = vunpack.c.l.b16 %v49
  %v118 = vunpack.c.l.b16 %v50
  %v119 = vunpack.c.l.b16 %v51
  %v120 = vunpack.c.l.b16 %v52
  %v121 = vunpack.c.l.b16 %v53
  %v122 = vunpack.c.l.b16 %v56
  %v123 = vunpack.c.l.b16 %v57
  %v124 = vunpack.c.l.b16 %v58
  %v125 = vunpack.c.l.b16 %v59
  %v126 = vunpack.c.l.b16 %v60
  %v127 = vunpack.c.l.b16 %v61
  %v128 = vunpack.c.l.b16 %v62
  %v129 = vunpack.c.l.b16 %v63
  %v130 = vunpack.c.l.b16 %v64
  %v131 = vunpack.c.l.b16 %v65
  %v132 = vunpack.c.l.b16 %v66
  %v133 = vunpack.c.l.b16 %v67
  %v134 = vunpack.c.l.b16 %v68
  %v135 = vunpack.c.l.b16 %v69
  %v136 = vunpack.c.l.b16 %v70
  %v137 = vunpack.c.l.b16 %v71
  %v138 = vpack.c.b16 %v107, %v106
  %v139 = vpack.c.b16 %v109, %v108
  %v140 = vpack.c.b16 %v111, %v110
  %v141 = vpack.c.b16 %v113, %v112
  %v142 = vpack.c.b16 %v115, %v114
  %v143 = vpack.c.b16 %v117, %v116
  %v144 = vpack.c.b16 %v119, %v118
  %v145 = vpack.c.b16 %v121, %v120
  %v146 = vpack.c.b16 %v123, %v122
  %v147 = vpack.c.b16 %v125, %v124
  %v148 = vpack.c.b16 %v127, %v126
  %v149 = vpack.c.b16 %v129, %v128
  %v150 = vpack.c.b16 %v131, %v130
  %v151 = vpack.c.b16 %v133, %v132
  %v152 = vpack.c.b16 %v135, %v134
  %v153 = vpack.c.b16 %v137, %v136
  %v155 = vshrl.u32 %v138, 16
  %v157 = vshll.u32 %v138, 16
  %v159 = vrot.slane %v157, 1
  %v160 = vor.u32 %v155, %v159
  %v162 = vshrl.u32 %v139, 16
  %v164 = vshll.u32 %v139, 16
  %v166 = vrot.slane %v164, 1
  %v167 = vor.u32 %v162, %v166
  %v169 = vshrl.u32 %v140, 16
  %v171 = vshll.u32 %v140, 16
  %v173 = vrot.slane %v171, 1
  %v174 = vor.u32 %v169, %v173
  %v176 = vshrl.u32 %v141, 16
  %v178 = vshll.u32 %v141, 16
  %v180 = vrot.slane %v178, 1
  %v181 = vor.u32 %v176, %v180
  %v183 = vshrl.u32 %v142, 16
  %v185 = vshll.u32 %v142, 16
  %v187 = vrot.slane %v185, 1
  %v188 = vor.u32 %v183, %v187
  %v190 = vshrl.u32 %v143, 16
  %v192 = vshll.u32 %v143, 16
  %v194 = vrot.slane %v192, 1
  %v195 = vor.u32 %v190, %v194
  %v197 = vshrl.u32 %v144, 16
  %v199 = vshll.u32 %v144, 16
  %v201 = vrot.slane %v199, 1
  %v202 = vor.u32 %v197, %v201
  %v204 = vshrl.u32 %v145, 16
  %v206 = vshll.u32 %v145, 16
  %v208 = vrot.slane %v206, 1
  %v209 = vor.u32 %v204, %v208
  %v211 = vshrl.u32 %v146, 16
  %v213 = vshll.u32 %v146, 16
  %v215 = vrot.slane %v213, 1
  %v216 = vor.u32 %v211, %v215
  %v218 = vshrl.u32 %v147, 16
  %v220 = vshll.u32 %v147, 16
  %v222 = vrot.slane %v220, 1
  %v223 = vor.u32 %v218, %v222
  %v225 = vshrl.u32 %v148, 16
  %v227 = vshll.u32 %v148, 16
  %v229 = vrot.slane %v227, 1
  %v230 = vor.u32 %v225, %v229
  %v232 = vshrl.u32 %v149, 16
  %v234 = vshll.u32 %v149, 16
  %v236 = vrot.slane %v234, 1
  %v237 = vor.u32 %v232, %v236
  %v239 = vshrl.u32 %v150, 16
  %v241 = vshll.u32 %v150, 16
  %v243 = vrot.slane %v241, 1
  %v244 = vor.u32 %v239, %v243
  %v246 = vshrl.u32 %v151, 16
  %v248 = vshll.u32 %v151, 16
  %v250 = vrot.slane %v248, 1
  %v251 = vor.u32 %v246, %v250
  %v253 = vshrl.u32 %v152, 16
  %v255 = vshll.u32 %v152, 16
  %v257 = vrot.slane %v255, 1
  %v258 = vor.u32 %v253, %v257
  %v260 = vshrl.u32 %v153, 16
  %v262 = vshll.u32 %v153, 16
  %v264 = vrot.slane %v262, 1
  %v265 = vor.u32 %v260, %v264
  %266 = vrot.lane.b32.xlu0 %v160, 16
  %v267 = vpop.permute.xlu0 %266
  %268 = vrot.lane.b32.xlu0 %v167, 16
  %v269 = vpop.permute.xlu0 %268
  %270 = vrot.lane.b32.xlu0 %v174, 16
  %v271 = vpop.permute.xlu0 %270
  %272 = vrot.lane.b32.xlu0 %v181, 16
  %v273 = vpop.permute.xlu0 %272
  %274 = vrot.lane.b32.xlu0 %v188, 16
  %v275 = vpop.permute.xlu0 %274
  %276 = vrot.lane.b32.xlu0 %v195, 16
  %v277 = vpop.permute.xlu0 %276
  %278 = vrot.lane.b32.xlu0 %v202, 16
  %v279 = vpop.permute.xlu0 %278
  %280 = vrot.lane.b32.xlu0 %v209, 16
  %v281 = vpop.permute.xlu0 %280
  %282 = vrot.lane.b32.xlu0 %v216, 16
  %v283 = vpop.permute.xlu0 %282
  %284 = vrot.lane.b32.xlu0 %v223, 16
  %v285 = vpop.permute.xlu0 %284
  %286 = vrot.lane.b32.xlu0 %v230, 16
  %v287 = vpop.permute.xlu0 %286
  %288 = vrot.lane.b32.xlu0 %v237, 16
  %v289 = vpop.permute.xlu0 %288
  %290 = vrot.lane.b32.xlu0 %v244, 16
  %v291 = vpop.permute.xlu0 %290
  %292 = vrot.lane.b32.xlu0 %v251, 16
  %v293 = vpop.permute.xlu0 %292
  %294 = vrot.lane.b32.xlu0 %v258, 16
  %v295 = vpop.permute.xlu0 %294
  %296 = vrot.lane.b32.xlu0 %v265, 16
  %v297 = vpop.permute.xlu0 %296
  %v300 = vunpack.c.l.b16 %v54
  %v301 = vunpack.c.l.b16 %v72
  %v302 = vpack.c.b16 %v108, %v108
  %v303 = vpack.c.b16 %v110, %v110
  %v304 = vpack.c.b16 %v112, %v112
  %v305 = vpack.c.b16 %v114, %v114
  %v306 = vpack.c.b16 %v116, %v116
  %v307 = vpack.c.b16 %v118, %v118
  %v308 = vpack.c.b16 %v120, %v120
  %v309 = vpack.c.b16 %v300, %v300
  %v310 = vpack.c.b16 %v124, %v124
  %v311 = vpack.c.b16 %v126, %v126
  %v312 = vpack.c.b16 %v128, %v128
  %v313 = vpack.c.b16 %v130, %v130
  %v314 = vpack.c.b16 %v132, %v132
  %v315 = vpack.c.b16 %v134, %v134
  %v316 = vpack.c.b16 %v136, %v136
  %v317 = vpack.c.b16 %v301, %v301
  %318 = vrot.lane.b32.xlu0 %v302, 32
  %v319 = vpop.permute.xlu0 %318
  %320 = vrot.lane.b32.xlu0 %v303, 32
  %v321 = vpop.permute.xlu0 %320
  %322 = vrot.lane.b32.xlu0 %v304, 32
  %v323 = vpop.permute.xlu0 %322
  %324 = vrot.lane.b32.xlu0 %v305, 32
  %v325 = vpop.permute.xlu0 %324
  %326 = vrot.lane.b32.xlu0 %v306, 32
  %v327 = vpop.permute.xlu0 %326
  %328 = vrot.lane.b32.xlu0 %v307, 32
  %v329 = vpop.permute.xlu0 %328
  %330 = vrot.lane.b32.xlu0 %v308, 32
  %v331 = vpop.permute.xlu0 %330
  %332 = vrot.lane.b32.xlu0 %v309, 32
  %v333 = vpop.permute.xlu0 %332
  %334 = vrot.lane.b32.xlu0 %v310, 32
  %v335 = vpop.permute.xlu0 %334
  %336 = vrot.lane.b32.xlu0 %v311, 32
  %v337 = vpop.permute.xlu0 %336
  %338 = vrot.lane.b32.xlu0 %v312, 32
  %v339 = vpop.permute.xlu0 %338
  %340 = vrot.lane.b32.xlu0 %v313, 32
  %v341 = vpop.permute.xlu0 %340
  %342 = vrot.lane.b32.xlu0 %v314, 32
  %v343 = vpop.permute.xlu0 %342
  %344 = vrot.lane.b32.xlu0 %v315, 32
  %v345 = vpop.permute.xlu0 %344
  %346 = vrot.lane.b32.xlu0 %v316, 32
  %v347 = vpop.permute.xlu0 %346
  %348 = vrot.lane.b32.xlu0 %v317, 32
  %v349 = vpop.permute.xlu0 %348
  %v352 = vunpack.c.l.b16 %v55
  %v353 = vunpack.c.l.b16 %v73
  %v354 = vpack.c.b16 %v352, %v300
  %v355 = vpack.c.b16 %v353, %v301
  %v357 = vshrl.u32 %v354, 16
  %v359 = vshll.u32 %v354, 16
  %v361 = vrot.slane %v359, 1
  %v362 = vor.u32 %v357, %v361
  %v364 = vshrl.u32 %v355, 16
  %v366 = vshll.u32 %v355, 16
  %v368 = vrot.slane %v366, 1
  %v369 = vor.u32 %v364, %v368
  %370 = vrot.lane.b32.xlu0 %v167, 48
  %v371 = vpop.permute.xlu0 %370
  %372 = vrot.lane.b32.xlu0 %v174, 48
  %v373 = vpop.permute.xlu0 %372
  %374 = vrot.lane.b32.xlu0 %v181, 48
  %v375 = vpop.permute.xlu0 %374
  %376 = vrot.lane.b32.xlu0 %v188, 48
  %v377 = vpop.permute.xlu0 %376
  %378 = vrot.lane.b32.xlu0 %v195, 48
  %v379 = vpop.permute.xlu0 %378
  %380 = vrot.lane.b32.xlu0 %v202, 48
  %v381 = vpop.permute.xlu0 %380
  %382 = vrot.lane.b32.xlu0 %v209, 48
  %v383 = vpop.permute.xlu0 %382
  %384 = vrot.lane.b32.xlu0 %v362, 48
  %v385 = vpop.permute.xlu0 %384
  %386 = vrot.lane.b32.xlu0 %v223, 48
  %v387 = vpop.permute.xlu0 %386
  %388 = vrot.lane.b32.xlu0 %v230, 48
  %v389 = vpop.permute.xlu0 %388
  %390 = vrot.lane.b32.xlu0 %v237, 48
  %v391 = vpop.permute.xlu0 %390
  %392 = vrot.lane.b32.xlu0 %v244, 48
  %v393 = vpop.permute.xlu0 %392
  %394 = vrot.lane.b32.xlu0 %v251, 48
  %v395 = vpop.permute.xlu0 %394
  %396 = vrot.lane.b32.xlu0 %v258, 48
  %v397 = vpop.permute.xlu0 %396
  %398 = vrot.lane.b32.xlu0 %v265, 48
  %v399 = vpop.permute.xlu0 %398
  %400 = vrot.lane.b32.xlu0 %v369, 48
  %v401 = vpop.permute.xlu0 %400
  %vm402 = vcmask 130048
  %v405 = vsel %vm402, %v38, %v267
  %v408 = vsel %vm402, %v40, %v269
  %v411 = vsel %vm402, %v42, %v271
  %v414 = vsel %vm402, %v44, %v273
  %v417 = vsel %vm402, %v46, %v275
  %v420 = vsel %vm402, %v48, %v277
  %v423 = vsel %vm402, %v50, %v279
  %v426 = vsel %vm402, %v52, %v281
  %v429 = vsel %vm402, %v56, %v283
  %v432 = vsel %vm402, %v58, %v285
  %v435 = vsel %vm402, %v60, %v287
  %v438 = vsel %vm402, %v62, %v289
  %v441 = vsel %vm402, %v64, %v291
  %v444 = vsel %vm402, %v66, %v293
  %v447 = vsel %vm402, %v68, %v295
  %v450 = vsel %vm402, %v70, %v297
  %vm451 = vcmask 261120
  %v453 = vsel %vm451, %v405, %v319
  %v455 = vsel %vm451, %v408, %v321
  %v457 = vsel %vm451, %v411, %v323
  %v459 = vsel %vm451, %v414, %v325
  %v461 = vsel %vm451, %v417, %v327
  %v463 = vsel %vm451, %v420, %v329
  %v465 = vsel %vm451, %v423, %v331
  %v467 = vsel %vm451, %v426, %v333
  %v469 = vsel %vm451, %v429, %v335
  %v471 = vsel %vm451, %v432, %v337
  %v473 = vsel %vm451, %v435, %v339
  %v475 = vsel %vm451, %v438, %v341
  %v477 = vsel %vm451, %v441, %v343
  %v479 = vsel %vm451, %v444, %v345
  %v481 = vsel %vm451, %v447, %v347
  %v483 = vsel %vm451, %v450, %v349
  %vm484 = vcmask 392192
  %v486 = vsel %vm484, %v453, %v371
  %v488 = vsel %vm484, %v455, %v373
  %v490 = vsel %vm484, %v457, %v375
  %v492 = vsel %vm484, %v459, %v377
  %v494 = vsel %vm484, %v461, %v379
  %v496 = vsel %vm484, %v463, %v381
  %v498 = vsel %vm484, %v465, %v383
  %v500 = vsel %vm484, %v467, %v385
  %v502 = vsel %vm484, %v469, %v387
  %v504 = vsel %vm484, %v471, %v389
  %v506 = vsel %vm484, %v473, %v391
  %v508 = vsel %vm484, %v475, %v393
  %v510 = vsel %vm484, %v477, %v395
  %v512 = vsel %vm484, %v479, %v397
  %v514 = vsel %vm484, %v481, %v399
  %v516 = vsel %vm484, %v483, %v401
  %v517 = vld [vmem:[%s1] sm:$0xf]
  %v518 = vld [vmem:[%s1 + $0x4] sm:$0xf]
  %v519 = vld [vmem:[%s1 + $0x8] sm:$0xf]
  %v520 = vld [vmem:[%s1 + $0xc] sm:$0xf]
  %v521 = vld [vmem:[%s1 + $0x10] sm:$0xf]
  %v522 = vld [vmem:[%s1 + $0x14] sm:$0xf]
  %v523 = vld [vmem:[%s1 + $0x18] sm:$0xf]
  %v524 = vld [vmem:[%s1 + $0x1c] sm:$0xf]
  %v525 = vld [vmem:[%s2] sm:$0x1]
  %v527 = vperm.slane %v525, 0
  %v545 = vunpack.c.l.b16 %v486
  %v546 = vunpack.c.l.b16 %v488
  %v547 = vunpack.c.l.b16 %v490
  %v548 = vunpack.c.l.b16 %v492
  %v549 = vunpack.c.l.b16 %v494
  %v550 = vunpack.c.l.b16 %v496
  %v551 = vunpack.c.l.b16 %v498
  %v552 = vunpack.c.l.b16 %v500
  %v553 = vunpack.c.l.b16 %v502
  %v554 = vunpack.c.l.b16 %v504
  %v555 = vunpack.c.l.b16 %v506
  %v556 = vunpack.c.l.b16 %v508
  %v557 = vunpack.c.l.b16 %v510
  %v558 = vunpack.c.l.b16 %v512
  %v559 = vunpack.c.l.b16 %v514
  %v560 = vunpack.c.l.b16 %v516
  %v561 = vpack.c.b16 %v546, %v545
  %v562 = vpack.c.b16 %v548, %v547
  %v563 = vpack.c.b16 %v550, %v549
  %v564 = vpack.c.b16 %v552, %v551
  %v565 = vpack.c.b16 %v554, %v553
  %v566 = vpack.c.b16 %v556, %v555
  %v567 = vpack.c.b16 %v558, %v557
  %v568 = vpack.c.b16 %v560, %v559
  %v577 = vunpack.c.l.b16 %v517
  %v578 = vunpack.c.l.b16 %v518
  %v579 = vunpack.c.l.b16 %v519
  %v580 = vunpack.c.l.b16 %v520
  %v581 = vunpack.c.l.b16 %v521
  %v582 = vunpack.c.l.b16 %v522
  %v583 = vunpack.c.l.b16 %v523
  %v584 = vunpack.c.l.b16 %v524
  %v585 = vpack.c.b16 %v578, %v577
  %v586 = vpack.c.b16 %v580, %v579
  %v587 = vpack.c.b16 %v582, %v581
  %v588 = vpack.c.b16 %v584, %v583
  %vm593 = vcmask 523264
  %v595 = vsel %vm593, %v561, 0
  %v598 = vsel %vm593, %v562, 0
  %v601 = vsel %vm593, %v563, 0
  %v604 = vsel %vm593, %v564, 0
  %v607 = vsel %vm593, %v565, 0
  %v610 = vsel %vm593, %v566, 0
  %v613 = vsel %vm593, %v567, 0
  %v616 = vsel %vm593, %v568, 0
  %618 = vmatpush.bf16.msra.mxu0 0
  %619 = vmatpush.bf16.msra.mxu0 0
  %620 = vmatpush.bf16.msra.mxu0 0
  %621 = vmatpush.bf16.msra.mxu0 0
  %622 = vmatpush.bf16.msra.mxu0 %v588
  %623 = vmatpush.bf16.msra.mxu0 %v587
  %624 = vmatpush.bf16.msra.mxu0 %v586
  %625 = vmatpush.bf16.msra.mxu0 %v585
  %626 = vmatmul.bf16.gmra.mxu0 %v595
  %v627 = vpop.f32.mrf.mxu0
  %v628 = vadd.f32 %v527, %v627
  %v629 = vpop.f32.mrf.mxu0
  %v630 = vadd.f32 %v527, %v629
  %631 = vmatmul.bf16.gmra.mxu0 %v598
  %v632 = vpop.f32.mrf.mxu0
  %v633 = vadd.f32 %v527, %v632
  %v634 = vpop.f32.mrf.mxu0
  %v635 = vadd.f32 %v527, %v634
  %636 = vmatmul.bf16.gmra.mxu0 %v601
  %v637 = vpop.f32.mrf.mxu0
  %v638 = vadd.f32 %v527, %v637
  %v639 = vpop.f32.mrf.mxu0
  %v640 = vadd.f32 %v527, %v639
  %641 = vmatmul.bf16.gmra.mxu0 %v604
  %v642 = vpop.f32.mrf.mxu0
  %v643 = vadd.f32 %v527, %v642
  %v644 = vpop.f32.mrf.mxu0
  %v645 = vadd.f32 %v527, %v644
  %646 = vmatmul.bf16.gmra.mxu0 %v607
  %v647 = vpop.f32.mrf.mxu0
  %v648 = vadd.f32 %v527, %v647
  %v649 = vpop.f32.mrf.mxu0
  %v650 = vadd.f32 %v527, %v649
  %651 = vmatmul.bf16.gmra.mxu0 %v610
  %v652 = vpop.f32.mrf.mxu0
  %v653 = vadd.f32 %v527, %v652
  %v654 = vpop.f32.mrf.mxu0
  %v655 = vadd.f32 %v527, %v654
  %656 = vmatmul.bf16.gmra.mxu0 %v613
  %v657 = vpop.f32.mrf.mxu0
  %v658 = vadd.f32 %v527, %v657
  %v659 = vpop.f32.mrf.mxu0
  %v660 = vadd.f32 %v527, %v659
  %661 = vmatmul.bf16.gmra.mxu0 %v616
  %v662 = vpop.f32.mrf.mxu0
  %v663 = vadd.f32 %v527, %v662
  %v664 = vpop.f32.mrf.mxu0
  %v665 = vadd.f32 %v527, %v664
  %666 = vdwg.mxu0
  %v667 = vmax.f32 %v628, 0.0
  %v668 = vmax.f32 %v630, 0.0
  %v669 = vmax.f32 %v633, 0.0
  %v670 = vmax.f32 %v635, 0.0
  %v671 = vmax.f32 %v638, 0.0
  %v672 = vmax.f32 %v640, 0.0
  %v673 = vmax.f32 %v643, 0.0
  %v674 = vmax.f32 %v645, 0.0
  %v675 = vmax.f32 %v648, 0.0
  %v676 = vmax.f32 %v650, 0.0
  %v677 = vmax.f32 %v653, 0.0
  %v678 = vmax.f32 %v655, 0.0
  %v679 = vmax.f32 %v658, 0.0
  %v680 = vmax.f32 %v660, 0.0
  %v681 = vmax.f32 %v663, 0.0
  %v682 = vmax.f32 %v665, 0.0
  %683 = vst.msk [vmem:[#allocation2] sm:$0xff] %vm402, 0.0
  %vm684 = vcmask 123904
  %685 = vst.msk [vmem:[#allocation2 + $0x8] sm:$0x3] %vm684, 0.0
  %686 = vst.msk [vmem:[#allocation2 + $0xa0] sm:$0xff] %vm402, 0.0
  %687 = vst.msk [vmem:[#allocation2 + $0xa8] sm:$0x3] %vm684, 0.0
  %s688 = scalar_lea.vmem [#allocation2], 144
  %689 = vst.msk [vmem:[%s688] sm:$0xff] %vm402, 0.0
  %690 = vst.msk [vmem:[%s688 + $0x8] sm:$0x3] %vm684, 0.0
  %691 = vst.msk [vmem:[%s688 + $0xa0] sm:$0xff] %vm402, 0.0
  %692 = vst.msk [vmem:[%s688 + $0xa8] sm:$0x3] %vm684, 0.0
  %vm693 = vcmask 122880
  %694 = vst.msk [vmem:[#allocation2] sm:$0x1] %vm693, 0.0
  %695 = vst.msk [vmem:[#allocation2 + $0x10] sm:$0x1] %vm693, 0.0
  %696 = vst.msk [vmem:[#allocation2 + $0x20] sm:$0x1] %vm693, 0.0
  %697 = vst.msk [vmem:[#allocation2 + $0x30] sm:$0x1] %vm693, 0.0
  %698 = vst.msk [vmem:[#allocation2 + $0x40] sm:$0x1] %vm693, 0.0
  %699 = vst.msk [vmem:[#allocation2 + $0x50] sm:$0x1] %vm693, 0.0
  %700 = vst.msk [vmem:[#allocation2 + $0x60] sm:$0x1] %vm693, 0.0
  %701 = vst.msk [vmem:[#allocation2 + $0x70] sm:$0x1] %vm693, 0.0
  %702 = vst.msk [vmem:[#allocation2 + $0x80] sm:$0x1] %vm693, 0.0
  %703 = vst.msk [vmem:[#allocation2 + $0x90] sm:$0x1] %vm693, 0.0
  %704 = vst.msk [vmem:[#allocation2 + $0xa0] sm:$0x1] %vm693, 0.0
  %705 = vst.msk [vmem:[#allocation2 + $0xb0] sm:$0x1] %vm693, 0.0
  %706 = vst.msk [vmem:[#allocation2 + $0xc0] sm:$0x1] %vm693, 0.0
  %707 = vst.msk [vmem:[#allocation2 + $0xd0] sm:$0x1] %vm693, 0.0
  %708 = vst.msk [vmem:[#allocation2 + $0xe0] sm:$0x1] %vm693, 0.0
  %709 = vst.msk [vmem:[#allocation2 + $0xf0] sm:$0x1] %vm693, 0.0
  %710 = vst.msk [vmem:[#allocation2 + $0x100] sm:$0x1] %vm693, 0.0
  %711 = vst.msk [vmem:[#allocation2 + $0x110] sm:$0x1] %vm693, 0.0
  %712 = vst.msk [vmem:[#allocation2 + $0x120] sm:$0x1] %vm693, 0.0
  %713 = vst.msk [vmem:[#allocation2 + $0x130] sm:$0x1] %vm693, 0.0
  %714 = vst.msk [vmem:[#allocation2 + $0x9] sm:$0x1] %vm693, 0.0
  %715 = vst.msk [vmem:[#allocation2 + $0x19] sm:$0x1] %vm693, 0.0
  %716 = vst.msk [vmem:[#allocation2 + $0x29] sm:$0x1] %vm693, 0.0
  %717 = vst.msk [vmem:[#allocation2 + $0x39] sm:$0x1] %vm693, 0.0
  %718 = vst.msk [vmem:[#allocation2 + $0x49] sm:$0x1] %vm693, 0.0
  %719 = vst.msk [vmem:[#allocation2 + $0x59] sm:$0x1] %vm693, 0.0
  %720 = vst.msk [vmem:[#allocation2 + $0x69] sm:$0x1] %vm693, 0.0
  %721 = vst.msk [vmem:[#allocation2 + $0x79] sm:$0x1] %vm693, 0.0
  %722 = vst.msk [vmem:[#allocation2 + $0x89] sm:$0x1] %vm693, 0.0
  %723 = vst.msk [vmem:[#allocation2 + $0x99] sm:$0x1] %vm693, 0.0
  %724 = vst.msk [vmem:[#allocation2 + $0xa9] sm:$0x1] %vm693, 0.0
  %725 = vst.msk [vmem:[#allocation2 + $0xb9] sm:$0x1] %vm693, 0.0
  %726 = vst.msk [vmem:[#allocation2 + $0xc9] sm:$0x1] %vm693, 0.0
  %727 = vst.msk [vmem:[#allocation2 + $0xd9] sm:$0x1] %vm693, 0.0
  %728 = vst.msk [vmem:[#allocation2 + $0xe9] sm:$0x1] %vm693, 0.0
  %729 = vst.msk [vmem:[#allocation2 + $0xf9] sm:$0x1] %vm693, 0.0
  %730 = vst.msk [vmem:[#allocation2 + $0x109] sm:$0x1] %vm693, 0.0
  %731 = vst.msk [vmem:[#allocation2 + $0x119] sm:$0x1] %vm693, 0.0
  %732 = vst.msk [vmem:[#allocation2 + $0x129] sm:$0x1] %vm693, 0.0
  %733 = vst.msk [vmem:[#allocation2 + $0x139] sm:$0x1] %vm693, 0.0
  %s734 = scalar_lea.vmem [#allocation2], 16
  %735 = vst.msk [vmem:[%s734 + $0x1] sm:$0xff] %vm402, %v667
  %736 = vst.msk [vmem:[%s734 + $0x11] sm:$0xff] %vm402, %v668
  %737 = vst.msk [vmem:[%s734 + $0x21] sm:$0xff] %vm402, %v669
  %738 = vst.msk [vmem:[%s734 + $0x31] sm:$0xff] %vm402, %v670
  %739 = vst.msk [vmem:[%s734 + $0x41] sm:$0xff] %vm402, %v671
  %740 = vst.msk [vmem:[%s734 + $0x51] sm:$0xff] %vm402, %v672
  %741 = vst.msk [vmem:[%s734 + $0x61] sm:$0xff] %vm402, %v673
  %742 = vst.msk [vmem:[%s734 + $0x71] sm:$0xff] %vm402, %v674
  %743 = vst.msk [vmem:[%s734 + $0xa1] sm:$0xff] %vm402, %v675
  %744 = vst.msk [vmem:[%s734 + $0xb1] sm:$0xff] %vm402, %v676
  %745 = vst.msk [vmem:[%s734 + $0xc1] sm:$0xff] %vm402, %v677
  %746 = vst.msk [vmem:[%s734 + $0xd1] sm:$0xff] %vm402, %v678
  %747 = vst.msk [vmem:[%s734 + $0xe1] sm:$0xff] %vm402, %v679
  %748 = vst.msk [vmem:[%s734 + $0xf1] sm:$0xff] %vm402, %v680
  %749 = vst.msk [vmem:[%s734 + $0x101] sm:$0xff] %vm402, %v681
  %750 = vst.msk [vmem:[%s734 + $0x111] sm:$0xff] %vm402, %v682
  %v751 = vld [vmem:[#allocation2] sm:$0xff]
  %v752 = vld [vmem:[#allocation2 + $0x8] sm:$0x3]
  %v753 = vld [vmem:[#allocation2 + $0x10] sm:$0xff]
  %v754 = vld [vmem:[#allocation2 + $0x18] sm:$0x3]
  %v755 = vld [vmem:[#allocation2 + $0x20] sm:$0xff]
  %v756 = vld [vmem:[#allocation2 + $0x28] sm:$0x3]
  %v757 = vld [vmem:[#allocation2 + $0x30] sm:$0xff]
  %v758 = vld [vmem:[#allocation2 + $0x38] sm:$0x3]
  %v759 = vld [vmem:[#allocation2 + $0x40] sm:$0xff]
  %v760 = vld [vmem:[#allocation2 + $0x48] sm:$0x3]
  %v761 = vld [vmem:[#allocation2 + $0x50] sm:$0xff]
  %v762 = vld [vmem:[#allocation2 + $0x58] sm:$0x3]
  %v763 = vld [vmem:[#allocation2 + $0x60] sm:$0xff]
  %v764 = vld [vmem:[#allocation2 + $0x68] sm:$0x3]
  %v765 = vld [vmem:[#allocation2 + $0x70] sm:$0xff]
  %v766 = vld [vmem:[#allocation2 + $0x78] sm:$0x3]
  %v767 = vld [vmem:[#allocation2 + $0x80] sm:$0xff]
  %v768 = vld [vmem:[#allocation2 + $0x88] sm:$0x3]
  %v769 = vld [vmem:[#allocation2 + $0x90] sm:$0xff]
  %v770 = vld [vmem:[#allocation2 + $0x98] sm:$0x3]
  %v771 = vld [vmem:[#allocation2 + $0xa0] sm:$0xff]
  %v772 = vld [vmem:[#allocation2 + $0xa8] sm:$0x3]
  %v773 = vld [vmem:[#allocation2 + $0xb0] sm:$0xff]
  %v774 = vld [vmem:[#allocation2 + $0xb8] sm:$0x3]
  %v775 = vld [vmem:[#allocation2 + $0xc0] sm:$0xff]
  %v776 = vld [vmem:[#allocation2 + $0xc8] sm:$0x3]
  %v777 = vld [vmem:[#allocation2 + $0xd0] sm:$0xff]
  %v778 = vld [vmem:[#allocation2 + $0xd8] sm:$0x3]
  %v779 = vld [vmem:[#allocation2 + $0xe0] sm:$0xff]
  %v780 = vld [vmem:[#allocation2 + $0xe8] sm:$0x3]
  %v781 = vld [vmem:[#allocation2 + $0xf0] sm:$0xff]
  %v782 = vld [vmem:[#allocation2 + $0xf8] sm:$0x3]
  %v783 = vld [vmem:[#allocation2 + $0x100] sm:$0xff]
  %v784 = vld [vmem:[#allocation2 + $0x108] sm:$0x3]
  %v785 = vld [vmem:[#allocation2 + $0x110] sm:$0xff]
  %v786 = vld [vmem:[#allocation2 + $0x118] sm:$0x3]
  %v787 = vld [vmem:[#allocation2 + $0x120] sm:$0xff]
  %v788 = vld [vmem:[#allocation2 + $0x128] sm:$0x3]
  %v789 = vld [vmem:[#allocation2 + $0x130] sm:$0xff]
  %v790 = vld [vmem:[#allocation2 + $0x138] sm:$0x3]
  %vm823 = vcmask 1046528
  %v824 = vrot.slane %v751, 1
  %v825 = vrot.slane %v752, 1
  %v826 = vsel %vm823, %v824, %v825
  %v827 = vrot.slane %v753, 1
  %v828 = vrot.slane %v754, 1
  %v829 = vsel %vm823, %v827, %v828
  %v830 = vrot.slane %v755, 1
  %v831 = vrot.slane %v756, 1
  %v832 = vsel %vm823, %v830, %v831
  %v833 = vrot.slane %v757, 1
  %v834 = vrot.slane %v758, 1
  %v835 = vsel %vm823, %v833, %v834
  %v836 = vrot.slane %v759, 1
  %v837 = vrot.slane %v760, 1
  %v838 = vsel %vm823, %v836, %v837
  %v839 = vrot.slane %v761, 1
  %v840 = vrot.slane %v762, 1
  %v841 = vsel %vm823, %v839, %v840
  %v842 = vrot.slane %v763, 1
  %v843 = vrot.slane %v764, 1
  %v844 = vsel %vm823, %v842, %v843
  %v845 = vrot.slane %v765, 1
  %v846 = vrot.slane %v766, 1
  %v847 = vsel %vm823, %v845, %v846
  %v848 = vrot.slane %v771, 1
  %v849 = vrot.slane %v772, 1
  %v850 = vsel %vm823, %v848, %v849
  %v851 = vrot.slane %v773, 1
  %v852 = vrot.slane %v774, 1
  %v853 = vsel %vm823, %v851, %v852
  %v854 = vrot.slane %v775, 1
  %v855 = vrot.slane %v776, 1
  %v856 = vsel %vm823, %v854, %v855
  %v857 = vrot.slane %v777, 1
  %v858 = vrot.slane %v778, 1
  %v859 = vsel %vm823, %v857, %v858
  %v860 = vrot.slane %v779, 1
  %v861 = vrot.slane %v780, 1
  %v862 = vsel %vm823, %v860, %v861
  %v863 = vrot.slane %v781, 1
  %v864 = vrot.slane %v782, 1
  %v865 = vsel %vm823, %v863, %v864
  %v866 = vrot.slane %v783, 1
  %v867 = vrot.slane %v784, 1
  %v868 = vsel %vm823, %v866, %v867
  %v869 = vrot.slane %v785, 1
  %v870 = vrot.slane %v786, 1
  %v871 = vsel %vm823, %v869, %v870
  %872 = vrot.lane.b32.xlu0 %v826, 16
  %v873 = vpop.permute.xlu0 %872
  %874 = vrot.lane.b32.xlu0 %v829, 16
  %v875 = vpop.permute.xlu0 %874
  %876 = vrot.lane.b32.xlu0 %v832, 16
  %v877 = vpop.permute.xlu0 %876
  %878 = vrot.lane.b32.xlu0 %v835, 16
  %v879 = vpop.permute.xlu0 %878
  %880 = vrot.lane.b32.xlu0 %v838, 16
  %v881 = vpop.permute.xlu0 %880
  %882 = vrot.lane.b32.xlu0 %v841, 16
  %v883 = vpop.permute.xlu0 %882
  %884 = vrot.lane.b32.xlu0 %v844, 16
  %v885 = vpop.permute.xlu0 %884
  %886 = vrot.lane.b32.xlu0 %v847, 16
  %v887 = vpop.permute.xlu0 %886
  %888 = vrot.lane.b32.xlu0 %v850, 16
  %v889 = vpop.permute.xlu0 %888
  %890 = vrot.lane.b32.xlu0 %v853, 16
  %v891 = vpop.permute.xlu0 %890
  %892 = vrot.lane.b32.xlu0 %v856, 16
  %v893 = vpop.permute.xlu0 %892
  %894 = vrot.lane.b32.xlu0 %v859, 16
  %v895 = vpop.permute.xlu0 %894
  %896 = vrot.lane.b32.xlu0 %v862, 16
  %v897 = vpop.permute.xlu0 %896
  %898 = vrot.lane.b32.xlu0 %v865, 16
  %v899 = vpop.permute.xlu0 %898
  %900 = vrot.lane.b32.xlu0 %v868, 16
  %v901 = vpop.permute.xlu0 %900
  %902 = vrot.lane.b32.xlu0 %v871, 16
  %v903 = vpop.permute.xlu0 %902
  %vm920 = vcmask 1045504
  %v921 = vrot.slane %v751, 2
  %v922 = vrot.slane %v752, 2
  %v923 = vsel %vm920, %v921, %v922
  %v924 = vrot.slane %v753, 2
  %v925 = vrot.slane %v754, 2
  %v926 = vsel %vm920, %v924, %v925
  %v927 = vrot.slane %v755, 2
  %v928 = vrot.slane %v756, 2
  %v929 = vsel %vm920, %v927, %v928
  %v930 = vrot.slane %v757, 2
  %v931 = vrot.slane %v758, 2
  %v932 = vsel %vm920, %v930, %v931
  %v933 = vrot.slane %v759, 2
  %v934 = vrot.slane %v760, 2
  %v935 = vsel %vm920, %v933, %v934
  %v936 = vrot.slane %v761, 2
  %v937 = vrot.slane %v762, 2
  %v938 = vsel %vm920, %v936, %v937
  %v939 = vrot.slane %v763, 2
  %v940 = vrot.slane %v764, 2
  %v941 = vsel %vm920, %v939, %v940
  %v942 = vrot.slane %v765, 2
  %v943 = vrot.slane %v766, 2
  %v944 = vsel %vm920, %v942, %v943
  %v945 = vrot.slane %v771, 2
  %v946 = vrot.slane %v772, 2
  %v947 = vsel %vm920, %v945, %v946
  %v948 = vrot.slane %v773, 2
  %v949 = vrot.slane %v774, 2
  %v950 = vsel %vm920, %v948, %v949
  %v951 = vrot.slane %v775, 2
  %v952 = vrot.slane %v776, 2
  %v953 = vsel %vm920, %v951, %v952
  %v954 = vrot.slane %v777, 2
  %v955 = vrot.slane %v778, 2
  %v956 = vsel %vm920, %v954, %v955
  %v957 = vrot.slane %v779, 2
  %v958 = vrot.slane %v780, 2
  %v959 = vsel %vm920, %v957, %v958
  %v960 = vrot.slane %v781, 2
  %v961 = vrot.slane %v782, 2
  %v962 = vsel %vm920, %v960, %v961
  %v963 = vrot.slane %v783, 2
  %v964 = vrot.slane %v784, 2
  %v965 = vsel %vm920, %v963, %v964
  %v966 = vrot.slane %v785, 2
  %v967 = vrot.slane %v786, 2
  %v968 = vsel %vm920, %v966, %v967
  %969 = vrot.lane.b32.xlu0 %v923, 32
  %v970 = vpop.permute.xlu0 %969
  %971 = vrot.lane.b32.xlu0 %v926, 32
  %v972 = vpop.permute.xlu0 %971
  %973 = vrot.lane.b32.xlu0 %v929, 32
  %v974 = vpop.permute.xlu0 %973
  %975 = vrot.lane.b32.xlu0 %v932, 32
  %v976 = vpop.permute.xlu0 %975
  %977 = vrot.lane.b32.xlu0 %v935, 32
  %v978 = vpop.permute.xlu0 %977
  %979 = vrot.lane.b32.xlu0 %v938, 32
  %v980 = vpop.permute.xlu0 %979
  %981 = vrot.lane.b32.xlu0 %v941, 32
  %v982 = vpop.permute.xlu0 %981
  %983 = vrot.lane.b32.xlu0 %v944, 32
  %v984 = vpop.permute.xlu0 %983
  %985 = vrot.lane.b32.xlu0 %v947, 32
  %v986 = vpop.permute.xlu0 %985
  %987 = vrot.lane.b32.xlu0 %v950, 32
  %v988 = vpop.permute.xlu0 %987
  %989 = vrot.lane.b32.xlu0 %v953, 32
  %v990 = vpop.permute.xlu0 %989
  %991 = vrot.lane.b32.xlu0 %v956, 32
  %v992 = vpop.permute.xlu0 %991
  %993 = vrot.lane.b32.xlu0 %v959, 32
  %v994 = vpop.permute.xlu0 %993
  %995 = vrot.lane.b32.xlu0 %v962, 32
  %v996 = vpop.permute.xlu0 %995
  %997 = vrot.lane.b32.xlu0 %v965, 32
  %v998 = vpop.permute.xlu0 %997
  %999 = vrot.lane.b32.xlu0 %v968, 32
  %v1000 = vpop.permute.xlu0 %999
  %1019 = vrot.lane.b32.xlu0 %v753, 48
  %v1020 = vpop.permute.xlu0 %1019
  %1021 = vrot.lane.b32.xlu0 %v755, 48
  %v1022 = vpop.permute.xlu0 %1021
  %1023 = vrot.lane.b32.xlu0 %v757, 48
  %v1024 = vpop.permute.xlu0 %1023
  %1025 = vrot.lane.b32.xlu0 %v759, 48
  %v1026 = vpop.permute.xlu0 %1025
  %1027 = vrot.lane.b32.xlu0 %v761, 48
  %v1028 = vpop.permute.xlu0 %1027
  %1029 = vrot.lane.b32.xlu0 %v763, 48
  %v1030 = vpop.permute.xlu0 %1029
  %1031 = vrot.lane.b32.xlu0 %v765, 48
  %v1032 = vpop.permute.xlu0 %1031
  %1033 = vrot.lane.b32.xlu0 %v767, 48
  %v1034 = vpop.permute.xlu0 %1033
  %1035 = vrot.lane.b32.xlu0 %v773, 48
  %v1036 = vpop.permute.xlu0 %1035
  %1037 = vrot.lane.b32.xlu0 %v775, 48
  %v1038 = vpop.permute.xlu0 %1037
  %1039 = vrot.lane.b32.xlu0 %v777, 48
  %v1040 = vpop.permute.xlu0 %1039
  %1041 = vrot.lane.b32.xlu0 %v779, 48
  %v1042 = vpop.permute.xlu0 %1041
  %1043 = vrot.lane.b32.xlu0 %v781, 48
  %v1044 = vpop.permute.xlu0 %1043
  %1045 = vrot.lane.b32.xlu0 %v783, 48
  %v1046 = vpop.permute.xlu0 %1045
  %1047 = vrot.lane.b32.xlu0 %v785, 48
  %v1048 = vpop.permute.xlu0 %1047
  %1049 = vrot.lane.b32.xlu0 %v787, 48
  %v1050 = vpop.permute.xlu0 %1049
  %v1069 = vrot.slane %v767, 1
  %v1070 = vrot.slane %v768, 1
  %v1071 = vsel %vm823, %v1069, %v1070
  %v1072 = vrot.slane %v787, 1
  %v1073 = vrot.slane %v788, 1
  %v1074 = vsel %vm823, %v1072, %v1073
  %1075 = vrot.lane.b32.xlu0 %v829, 64
  %v1076 = vpop.permute.xlu0 %1075
  %1077 = vrot.lane.b32.xlu0 %v832, 64
  %v1078 = vpop.permute.xlu0 %1077
  %1079 = vrot.lane.b32.xlu0 %v835, 64
  %v1080 = vpop.permute.xlu0 %1079
  %1081 = vrot.lane.b32.xlu0 %v838, 64
  %v1082 = vpop.permute.xlu0 %1081
  %1083 = vrot.lane.b32.xlu0 %v841, 64
  %v1084 = vpop.permute.xlu0 %1083
  %1085 = vrot.lane.b32.xlu0 %v844, 64
  %v1086 = vpop.permute.xlu0 %1085
  %1087 = vrot.lane.b32.xlu0 %v847, 64
  %v1088 = vpop.permute.xlu0 %1087
  %1089 = vrot.lane.b32.xlu0 %v1071, 64
  %v1090 = vpop.permute.xlu0 %1089
  %1091 = vrot.lane.b32.xlu0 %v853, 64
  %v1092 = vpop.permute.xlu0 %1091
  %1093 = vrot.lane.b32.xlu0 %v856, 64
  %v1094 = vpop.permute.xlu0 %1093
  %1095 = vrot.lane.b32.xlu0 %v859, 64
  %v1096 = vpop.permute.xlu0 %1095
  %1097 = vrot.lane.b32.xlu0 %v862, 64
  %v1098 = vpop.permute.xlu0 %1097
  %1099 = vrot.lane.b32.xlu0 %v865, 64
  %v1100 = vpop.permute.xlu0 %1099
  %1101 = vrot.lane.b32.xlu0 %v868, 64
  %v1102 = vpop.permute.xlu0 %1101
  %1103 = vrot.lane.b32.xlu0 %v871, 64
  %v1104 = vpop.permute.xlu0 %1103
  %1105 = vrot.lane.b32.xlu0 %v1074, 64
  %v1106 = vpop.permute.xlu0 %1105
  %v1123 = vrot.slane %v767, 2
  %v1124 = vrot.slane %v768, 2
  %v1125 = vsel %vm920, %v1123, %v1124
  %v1126 = vrot.slane %v787, 2
  %v1127 = vrot.slane %v788, 2
  %v1128 = vsel %vm920, %v1126, %v1127
  %1129 = vrot.lane.b32.xlu0 %v926, 80
  %v1130 = vpop.permute.xlu0 %1129
  %1131 = vrot.lane.b32.xlu0 %v929, 80
  %v1132 = vpop.permute.xlu0 %1131
  %1133 = vrot.lane.b32.xlu0 %v932, 80
  %v1134 = vpop.permute.xlu0 %1133
  %1135 = vrot.lane.b32.xlu0 %v935, 80
  %v1136 = vpop.permute.xlu0 %1135
  %1137 = vrot.lane.b32.xlu0 %v938, 80
  %v1138 = vpop.permute.xlu0 %1137
  %1139 = vrot.lane.b32.xlu0 %v941, 80
  %v1140 = vpop.permute.xlu0 %1139
  %1141 = vrot.lane.b32.xlu0 %v944, 80
  %v1142 = vpop.permute.xlu0 %1141
  %1143 = vrot.lane.b32.xlu0 %v1125, 80
  %v1144 = vpop.permute.xlu0 %1143
  %1145 = vrot.lane.b32.xlu0 %v950, 80
  %v1146 = vpop.permute.xlu0 %1145
  %1147 = vrot.lane.b32.xlu0 %v953, 80
  %v1148 = vpop.permute.xlu0 %1147
  %1149 = vrot.lane.b32.xlu0 %v956, 80
  %v1150 = vpop.permute.xlu0 %1149
  %1151 = vrot.lane.b32.xlu0 %v959, 80
  %v1152 = vpop.permute.xlu0 %1151
  %1153 = vrot.lane.b32.xlu0 %v962, 80
  %v1154 = vpop.permute.xlu0 %1153
  %1155 = vrot.lane.b32.xlu0 %v965, 80
  %v1156 = vpop.permute.xlu0 %1155
  %1157 = vrot.lane.b32.xlu0 %v968, 80
  %v1158 = vpop.permute.xlu0 %1157
  %1159 = vrot.lane.b32.xlu0 %v1128, 80
  %v1160 = vpop.permute.xlu0 %1159
  %1179 = vrot.lane.b32.xlu0 %v755, 96
  %v1180 = vpop.permute.xlu0 %1179
  %1181 = vrot.lane.b32.xlu0 %v757, 96
  %v1182 = vpop.permute.xlu0 %1181
  %1183 = vrot.lane.b32.xlu0 %v759, 96
  %v1184 = vpop.permute.xlu0 %1183
  %1185 = vrot.lane.b32.xlu0 %v761, 96
  %v1186 = vpop.permute.xlu0 %1185
  %1187 = vrot.lane.b32.xlu0 %v763, 96
  %v1188 = vpop.permute.xlu0 %1187
  %1189 = vrot.lane.b32.xlu0 %v765, 96
  %v1190 = vpop.permute.xlu0 %1189
  %1191 = vrot.lane.b32.xlu0 %v767, 96
  %v1192 = vpop.permute.xlu0 %1191
  %1193 = vrot.lane.b32.xlu0 %v769, 96
  %v1194 = vpop.permute.xlu0 %1193
  %1195 = vrot.lane.b32.xlu0 %v775, 96
  %v1196 = vpop.permute.xlu0 %1195
  %1197 = vrot.lane.b32.xlu0 %v777, 96
  %v1198 = vpop.permute.xlu0 %1197
  %1199 = vrot.lane.b32.xlu0 %v779, 96
  %v1200 = vpop.permute.xlu0 %1199
  %1201 = vrot.lane.b32.xlu0 %v781, 96
  %v1202 = vpop.permute.xlu0 %1201
  %1203 = vrot.lane.b32.xlu0 %v783, 96
  %v1204 = vpop.permute.xlu0 %1203
  %1205 = vrot.lane.b32.xlu0 %v785, 96
  %v1206 = vpop.permute.xlu0 %1205
  %1207 = vrot.lane.b32.xlu0 %v787, 96
  %v1208 = vpop.permute.xlu0 %1207
  %1209 = vrot.lane.b32.xlu0 %v789, 96
  %v1210 = vpop.permute.xlu0 %1209
  %v1229 = vrot.slane %v769, 1
  %v1230 = vrot.slane %v770, 1
  %v1231 = vsel %vm823, %v1229, %v1230
  %v1232 = vrot.slane %v789, 1
  %v1233 = vrot.slane %v790, 1
  %v1234 = vsel %vm823, %v1232, %v1233
  %1235 = vrot.lane.b32.xlu0 %v832, 112
  %v1236 = vpop.permute.xlu0 %1235
  %1237 = vrot.lane.b32.xlu0 %v835, 112
  %v1238 = vpop.permute.xlu0 %1237
  %1239 = vrot.lane.b32.xlu0 %v838, 112
  %v1240 = vpop.permute.xlu0 %1239
  %1241 = vrot.lane.b32.xlu0 %v841, 112
  %v1242 = vpop.permute.xlu0 %1241
  %1243 = vrot.lane.b32.xlu0 %v844, 112
  %v1244 = vpop.permute.xlu0 %1243
  %1245 = vrot.lane.b32.xlu0 %v847, 112
  %v1246 = vpop.permute.xlu0 %1245
  %1247 = vrot.lane.b32.xlu0 %v1071, 112
  %v1248 = vpop.permute.xlu0 %1247
  %1249 = vrot.lane.b32.xlu0 %v1231, 112
  %v1250 = vpop.permute.xlu0 %1249
  %1251 = vrot.lane.b32.xlu0 %v856, 112
  %v1252 = vpop.permute.xlu0 %1251
  %1253 = vrot.lane.b32.xlu0 %v859, 112
  %v1254 = vpop.permute.xlu0 %1253
  %1255 = vrot.lane.b32.xlu0 %v862, 112
  %v1256 = vpop.permute.xlu0 %1255
  %1257 = vrot.lane.b32.xlu0 %v865, 112
  %v1258 = vpop.permute.xlu0 %1257
  %1259 = vrot.lane.b32.xlu0 %v868, 112
  %v1260 = vpop.permute.xlu0 %1259
  %1261 = vrot.lane.b32.xlu0 %v871, 112
  %v1262 = vpop.permute.xlu0 %1261
  %1263 = vrot.lane.b32.xlu0 %v1074, 112
  %v1264 = vpop.permute.xlu0 %1263
  %1265 = vrot.lane.b32.xlu0 %v1234, 112
  %v1266 = vpop.permute.xlu0 %1265
  %v1283 = vrot.slane %v769, 2
  %v1284 = vrot.slane %v770, 2
  %v1285 = vsel %vm920, %v1283, %v1284
  %v1286 = vrot.slane %v789, 2
  %v1287 = vrot.slane %v790, 2
  %v1288 = vsel %vm920, %v1286, %v1287
  %v1305 = vsel %vm402, %v751, %v873
  %v1306 = vsel %vm402, %v753, %v875
  %v1307 = vsel %vm402, %v755, %v877
  %v1308 = vsel %vm402, %v757, %v879
  %v1309 = vsel %vm402, %v759, %v881
  %v1310 = vsel %vm402, %v761, %v883
  %v1311 = vsel %vm402, %v763, %v885
  %v1312 = vsel %vm402, %v765, %v887
  %v1313 = vsel %vm402, %v771, %v889
  %v1314 = vsel %vm402, %v773, %v891
  %v1315 = vsel %vm402, %v775, %v893
  %v1316 = vsel %vm402, %v777, %v895
  %v1317 = vsel %vm402, %v779, %v897
  %v1318 = vsel %vm402, %v781, %v899
  %v1319 = vsel %vm402, %v783, %v901
  %v1320 = vsel %vm402, %v785, %v903
  %v1321 = vsel %vm451, %v1305, %v970
  %v1322 = vsel %vm451, %v1306, %v972
  %v1323 = vsel %vm451, %v1307, %v974
  %v1324 = vsel %vm451, %v1308, %v976
  %v1325 = vsel %vm451, %v1309, %v978
  %v1326 = vsel %vm451, %v1310, %v980
  %v1327 = vsel %vm451, %v1311, %v982
  %v1328 = vsel %vm451, %v1312, %v984
  %v1329 = vsel %vm451, %v1313, %v986
  %v1330 = vsel %vm451, %v1314, %v988
  %v1331 = vsel %vm451, %v1315, %v990
  %v1332 = vsel %vm451, %v1316, %v992
  %v1333 = vsel %vm451, %v1317, %v994
  %v1334 = vsel %vm451, %v1318, %v996
  %v1335 = vsel %vm451, %v1319, %v998
  %v1336 = vsel %vm451, %v1320, %v1000
  %v1337 = vsel %vm484, %v1321, %v1020
  %v1338 = vsel %vm484, %v1322, %v1022
  %v1339 = vsel %vm484, %v1323, %v1024
  %v1340 = vsel %vm484, %v1324, %v1026
  %v1341 = vsel %vm484, %v1325, %v1028
  %v1342 = vsel %vm484, %v1326, %v1030
  %v1343 = vsel %vm484, %v1327, %v1032
  %v1344 = vsel %vm484, %v1328, %v1034
  %v1345 = vsel %vm484, %v1329, %v1036
  %v1346 = vsel %vm484, %v1330, %v1038
  %v1347 = vsel %vm484, %v1331, %v1040
  %v1348 = vsel %vm484, %v1332, %v1042
  %v1349 = vsel %vm484, %v1333, %v1044
  %v1350 = vsel %vm484, %v1334, %v1046
  %v1351 = vsel %vm484, %v1335, %v1048
  %v1352 = vsel %vm484, %v1336, %v1050
  %v1353 = vsel %vm593, %v1337, %v1076
  %v1354 = vsel %vm593, %v1338, %v1078
  %v1355 = vsel %vm593, %v1339, %v1080
  %v1356 = vsel %vm593, %v1340, %v1082
  %v1357 = vsel %vm593, %v1341, %v1084
  %v1358 = vsel %vm593, %v1342, %v1086
  %v1359 = vsel %vm593, %v1343, %v1088
  %v1360 = vsel %vm593, %v1344, %v1090
  %v1361 = vsel %vm593, %v1345, %v1092
  %v1362 = vsel %vm593, %v1346, %v1094
  %v1363 = vsel %vm593, %v1347, %v1096
  %v1364 = vsel %vm593, %v1348, %v1098
  %v1365 = vsel %vm593, %v1349, %v1100
  %v1366 = vsel %vm593, %v1350, %v1102
  %v1367 = vsel %vm593, %v1351, %v1104
  %v1368 = vsel %vm593, %v1352, %v1106
  %vm1369 = vcmask 654336
  %v1370 = vsel %vm1369, %v1353, %v1130
  %v1371 = vsel %vm1369, %v1354, %v1132
  %v1372 = vsel %vm1369, %v1355, %v1134
  %v1373 = vsel %vm1369, %v1356, %v1136
  %v1374 = vsel %vm1369, %v1357, %v1138
  %v1375 = vsel %vm1369, %v1358, %v1140
  %v1376 = vsel %vm1369, %v1359, %v1142
  %v1377 = vsel %vm1369, %v1360, %v1144
  %v1378 = vsel %vm1369, %v1361, %v1146
  %v1379 = vsel %vm1369, %v1362, %v1148
  %v1380 = vsel %vm1369, %v1363, %v1150
  %v1381 = vsel %vm1369, %v1364, %v1152
  %v1382 = vsel %vm1369, %v1365, %v1154
  %v1383 = vsel %vm1369, %v1366, %v1156
  %v1384 = vsel %vm1369, %v1367, %v1158
  %v1385 = vsel %vm1369, %v1368, %v1160
  %vm1386 = vcmask 785408
  %v1387 = vsel %vm1386, %v1370, %v1180
  %v1388 = vsel %vm1386, %v1371, %v1182
  %v1389 = vsel %vm1386, %v1372, %v1184
  %v1390 = vsel %vm1386, %v1373, %v1186
  %v1391 = vsel %vm1386, %v1374, %v1188
  %v1392 = vsel %vm1386, %v1375, %v1190
  %v1393 = vsel %vm1386, %v1376, %v1192
  %v1394 = vsel %vm1386, %v1377, %v1194
  %v1395 = vsel %vm1386, %v1378, %v1196
  %v1396 = vsel %vm1386, %v1379, %v1198
  %v1397 = vsel %vm1386, %v1380, %v1200
  %v1398 = vsel %vm1386, %v1381, %v1202
  %v1399 = vsel %vm1386, %v1382, %v1204
  %v1400 = vsel %vm1386, %v1383, %v1206
  %v1401 = vsel %vm1386, %v1384, %v1208
  %v1402 = vsel %vm1386, %v1385, %v1210
  %vm1403 = vcmask 916480
  %v1404 = vsel %vm1403, %v1387, %v1236
  %v1405 = vsel %vm1403, %v1388, %v1238
  %v1406 = vsel %vm1403, %v1389, %v1240
  %v1407 = vsel %vm1403, %v1390, %v1242
  %v1408 = vsel %vm1403, %v1391, %v1244
  %v1409 = vsel %vm1403, %v1392, %v1246
  %v1410 = vsel %vm1403, %v1393, %v1248
  %v1411 = vsel %vm1403, %v1394, %v1250
  %v1412 = vsel %vm1403, %v1395, %v1252
  %v1413 = vsel %vm1403, %v1396, %v1254
  %v1414 = vsel %vm1403, %v1397, %v1256
  %v1415 = vsel %vm1403, %v1398, %v1258
  %v1416 = vsel %vm1403, %v1399, %v1260
  %v1417 = vsel %vm1403, %v1400, %v1262
  %v1418 = vsel %vm1403, %v1401, %v1264
  %v1419 = vsel %vm1403, %v1402, %v1266
  %v1420 = vpack.c.bf16 %v1405, %v1404
  %v1421 = vpack.c.bf16 %v932, %v929
  %v1422 = vpack.c.bf16 %v1407, %v1406
  %v1423 = vpack.c.bf16 %v938, %v935
  %v1424 = vpack.c.bf16 %v1409, %v1408
  %v1425 = vpack.c.bf16 %v944, %v941
  %v1426 = vpack.c.bf16 %v1411, %v1410
  %v1427 = vpack.c.bf16 %v1285, %v1125
  %v1428 = vpack.c.bf16 %v1413, %v1412
  %v1429 = vpack.c.bf16 %v956, %v953
  %v1430 = vpack.c.bf16 %v1415, %v1414
  %v1431 = vpack.c.bf16 %v962, %v959
  %v1432 = vpack.c.bf16 %v1417, %v1416
  %v1433 = vpack.c.bf16 %v968, %v965
  %v1434 = vpack.c.bf16 %v1419, %v1418
  %v1435 = vpack.c.bf16 %v1288, %v1128
  %v1436 = vld [vmem:[%s3] sm:$0xf]
  %v1437 = vld [vmem:[%s3 + $0x4] sm:$0xf]
  %v1438 = vld [vmem:[%s3 + $0x8] sm:$0xf]
  %v1439 = vld [vmem:[%s3 + $0xc] sm:$0xf]
  %v1440 = vld [vmem:[%s3 + $0x10] sm:$0xf]
  %v1441 = vld [vmem:[%s3 + $0x14] sm:$0xf]
  %v1442 = vld [vmem:[%s3 + $0x18] sm:$0xf]
  %v1443 = vld [vmem:[%s3 + $0x1c] sm:$0xf]
  %v1444 = vld [vmem:[%s3 + $0x20] sm:$0xf]
  %v1445 = vld [vmem:[%s3 + $0x24] sm:$0xf]
  %v1446 = vld [vmem:[%s3 + $0x28] sm:$0xf]
  %v1447 = vld [vmem:[%s3 + $0x2c] sm:$0xf]
  %v1448 = vld [vmem:[%s3 + $0x30] sm:$0xf]
  %v1449 = vld [vmem:[%s3 + $0x34] sm:$0xf]
  %v1450 = vld [vmem:[%s3 + $0x38] sm:$0xf]
  %v1451 = vld [vmem:[%s3 + $0x3c] sm:$0xf]
  %v1452 = vld [vmem:[%s3 + $0x40] sm:$0xf]
  %v1453 = vld [vmem:[%s3 + $0x44] sm:$0xf]
  %v1454 = vld [vmem:[%s4] sm:$0x1]
  %v1456 = vperm.slane %v1454, 0
  %v1476 = vunpack.c.l.b16 %v1436
  %v1477 = vunpack.c.l.b16 %v1437
  %v1478 = vunpack.c.l.b16 %v1438
  %v1479 = vunpack.c.l.b16 %v1439
  %v1480 = vunpack.c.l.b16 %v1440
  %v1481 = vunpack.c.l.b16 %v1441
  %v1482 = vunpack.c.l.b16 %v1442
  %v1483 = vunpack.c.l.b16 %v1443
  %v1484 = vunpack.c.l.b16 %v1444
  %v1485 = vunpack.c.l.b16 %v1445
  %v1486 = vunpack.c.l.b16 %v1446
  %v1487 = vunpack.c.l.b16 %v1447
  %v1488 = vunpack.c.l.b16 %v1448
  %v1489 = vunpack.c.l.b16 %v1449
  %v1490 = vunpack.c.l.b16 %v1450
  %v1491 = vunpack.c.l.b16 %v1451
  %v1492 = vunpack.c.l.b16 %v1452
  %v1493 = vunpack.c.l.b16 %v1453
  %v1494 = vpack.c.b16 %v1477, %v1476
  %v1495 = vpack.c.b16 %v1479, %v1478
  %v1496 = vpack.c.b16 %v1481, %v1480
  %v1497 = vpack.c.b16 %v1483, %v1482
  %v1498 = vpack.c.b16 %v1485, %v1484
  %v1499 = vpack.c.b16 %v1487, %v1486
  %v1500 = vpack.c.b16 %v1489, %v1488
  %v1501 = vpack.c.b16 %v1491, %v1490
  %v1502 = vpack.c.b16 %v1493, %v1492
  %v1513 = vsel %vm402, %v1421, 0
  %v1516 = vsel %vm402, %v1423, 0
  %v1519 = vsel %vm402, %v1425, 0
  %v1522 = vsel %vm402, %v1427, 0
  %v1525 = vsel %vm402, %v1429, 0
  %v1528 = vsel %vm402, %v1431, 0
  %v1531 = vsel %vm402, %v1433, 0
  %v1534 = vsel %vm402, %v1435, 0
  %1536 = vmatpush.bf16.msra.mxu0 %v1501
  %1537 = vmatpush.bf16.msra.mxu0 %v1500
  %1538 = vmatpush.bf16.msra.mxu0 %v1499
  %1539 = vmatpush.bf16.msra.mxu0 %v1498
  %1540 = vmatpush.bf16.msra.mxu0 %v1497
  %1541 = vmatpush.bf16.msra.mxu0 %v1496
  %1542 = vmatpush.bf16.msra.mxu0 %v1495
  %1543 = vmatpush.bf16.msra.mxu0 %v1494
  %1544 = vmatmul.bf16.gmra.mxu0 %v1420
  %v1545 = vpop.f32.mrf.mxu0
  %v1546 = vadd.f32 %v1456, %v1545
  %v1547 = vpop.f32.mrf.mxu0
  %v1548 = vadd.f32 %v1456, %v1547
  %1549 = vmatmul.bf16.gmra.mxu0 %v1422
  %v1550 = vpop.f32.mrf.mxu0
  %v1551 = vadd.f32 %v1456, %v1550
  %v1552 = vpop.f32.mrf.mxu0
  %v1553 = vadd.f32 %v1456, %v1552
  %1554 = vmatmul.bf16.gmra.mxu0 %v1424
  %v1555 = vpop.f32.mrf.mxu0
  %v1556 = vadd.f32 %v1456, %v1555
  %v1557 = vpop.f32.mrf.mxu0
  %v1558 = vadd.f32 %v1456, %v1557
  %1559 = vmatmul.bf16.gmra.mxu0 %v1426
  %v1560 = vpop.f32.mrf.mxu0
  %v1561 = vadd.f32 %v1456, %v1560
  %v1562 = vpop.f32.mrf.mxu0
  %v1563 = vadd.f32 %v1456, %v1562
  %1564 = vmatmul.bf16.gmra.mxu0 %v1428
  %v1565 = vpop.f32.mrf.mxu0
  %v1566 = vadd.f32 %v1456, %v1565
  %v1567 = vpop.f32.mrf.mxu0
  %v1568 = vadd.f32 %v1456, %v1567
  %1569 = vmatmul.bf16.gmra.mxu0 %v1430
  %v1570 = vpop.f32.mrf.mxu0
  %v1571 = vadd.f32 %v1456, %v1570
  %v1572 = vpop.f32.mrf.mxu0
  %v1573 = vadd.f32 %v1456, %v1572
  %1574 = vmatmul.bf16.gmra.mxu0 %v1432
  %v1575 = vpop.f32.mrf.mxu0
  %v1576 = vadd.f32 %v1456, %v1575
  %v1577 = vpop.f32.mrf.mxu0
  %v1578 = vadd.f32 %v1456, %v1577
  %1579 = vmatmul.bf16.gmra.mxu0 %v1434
  %v1580 = vpop.f32.mrf.mxu0
  %v1581 = vadd.f32 %v1456, %v1580
  %v1582 = vpop.f32.mrf.mxu0
  %v1583 = vadd.f32 %v1456, %v1582
  %1584 = vdwg.mxu0
  %1585 = vmatpush.bf16.msra.mxu0 0
  %1586 = vmatpush.bf16.msra.mxu0 0
  %1587 = vmatpush.bf16.msra.mxu0 0
  %1588 = vmatpush.bf16.msra.mxu0 0
  %1589 = vmatpush.bf16.msra.mxu0 0
  %1590 = vmatpush.bf16.msra.mxu0 0
  %1591 = vmatpush.bf16.msra.mxu0 0
  %1592 = vmatpush.bf16.msra.mxu0 %v1502
  %1593 = vmatmul.bf16.gmra.mxu0 %v1513
  %v1594 = vpop.f32.mrf.mxu0
  %v1595 = vadd.f32 %v1546, %v1594
  %v1596 = vpop.f32.mrf.mxu0
  %v1597 = vadd.f32 %v1548, %v1596
  %1598 = vmatmul.bf16.gmra.mxu0 %v1516
  %v1599 = vpop.f32.mrf.mxu0
  %v1600 = vadd.f32 %v1551, %v1599
  %v1601 = vpop.f32.mrf.mxu0
  %v1602 = vadd.f32 %v1553, %v1601
  %1603 = vmatmul.bf16.gmra.mxu0 %v1519
  %v1604 = vpop.f32.mrf.mxu0
  %v1605 = vadd.f32 %v1556, %v1604
  %v1606 = vpop.f32.mrf.mxu0
  %v1607 = vadd.f32 %v1558, %v1606
  %1608 = vmatmul.bf16.gmra.mxu0 %v1522
  %v1609 = vpop.f32.mrf.mxu0
  %v1610 = vadd.f32 %v1561, %v1609
  %v1611 = vpop.f32.mrf.mxu0
  %v1612 = vadd.f32 %v1563, %v1611
  %1613 = vmatmul.bf16.gmra.mxu0 %v1525
  %v1614 = vpop.f32.mrf.mxu0
  %v1615 = vadd.f32 %v1566, %v1614
  %v1616 = vpop.f32.mrf.mxu0
  %v1617 = vadd.f32 %v1568, %v1616
  %1618 = vmatmul.bf16.gmra.mxu0 %v1528
  %v1619 = vpop.f32.mrf.mxu0
  %v1620 = vadd.f32 %v1571, %v1619
  %v1621 = vpop.f32.mrf.mxu0
  %v1622 = vadd.f32 %v1573, %v1621
  %1623 = vmatmul.bf16.gmra.mxu0 %v1531
  %v1624 = vpop.f32.mrf.mxu0
  %v1625 = vadd.f32 %v1576, %v1624
  %v1626 = vpop.f32.mrf.mxu0
  %v1627 = vadd.f32 %v1578, %v1626
  %1628 = vmatmul.bf16.gmra.mxu0 %v1534
  %v1629 = vpop.f32.mrf.mxu0
  %v1630 = vadd.f32 %v1581, %v1629
  %v1631 = vpop.f32.mrf.mxu0
  %v1632 = vadd.f32 %v1583, %v1631
  %1633 = vdwg.mxu0
  %v1634 = vmax.f32 %v1595, 0.0
  %v1635 = vmax.f32 %v1597, 0.0
  %v1636 = vmax.f32 %v1600, 0.0
  %v1637 = vmax.f32 %v1602, 0.0
  %v1638 = vmax.f32 %v1605, 0.0
  %v1639 = vmax.f32 %v1607, 0.0
  %v1640 = vmax.f32 %v1610, 0.0
  %v1641 = vmax.f32 %v1612, 0.0
  %v1642 = vmax.f32 %v1615, 0.0
  %v1643 = vmax.f32 %v1617, 0.0
  %v1644 = vmax.f32 %v1620, 0.0
  %v1645 = vmax.f32 %v1622, 0.0
  %v1646 = vmax.f32 %v1625, 0.0
  %v1647 = vmax.f32 %v1627, 0.0
  %v1648 = vmax.f32 %v1630, 0.0
  %v1649 = vmax.f32 %v1632, 0.0
  %1650 = vst.msk [vmem:[%s734 + $0x1] sm:$0xff] %vm402, %v1634
  %1651 = vst.msk [vmem:[%s734 + $0x11] sm:$0xff] %vm402, %v1635
  %1652 = vst.msk [vmem:[%s734 + $0x21] sm:$0xff] %vm402, %v1636
  %1653 = vst.msk [vmem:[%s734 + $0x31] sm:$0xff] %vm402, %v1637
  %1654 = vst.msk [vmem:[%s734 + $0x41] sm:$0xff] %vm402, %v1638
  %1655 = vst.msk [vmem:[%s734 + $0x51] sm:$0xff] %vm402, %v1639
  %1656 = vst.msk [vmem:[%s734 + $0x61] sm:$0xff] %vm402, %v1640
  %1657 = vst.msk [vmem:[%s734 + $0x71] sm:$0xff] %vm402, %v1641
  %1658 = vst.msk [vmem:[%s734 + $0xa1] sm:$0xff] %vm402, %v1642
  %1659 = vst.msk [vmem:[%s734 + $0xb1] sm:$0xff] %vm402, %v1643
  %1660 = vst.msk [vmem:[%s734 + $0xc1] sm:$0xff] %vm402, %v1644
  %1661 = vst.msk [vmem:[%s734 + $0xd1] sm:$0xff] %vm402, %v1645
  %1662 = vst.msk [vmem:[%s734 + $0xe1] sm:$0xff] %vm402, %v1646
  %1663 = vst.msk [vmem:[%s734 + $0xf1] sm:$0xff] %vm402, %v1647
  %1664 = vst.msk [vmem:[%s734 + $0x101] sm:$0xff] %vm402, %v1648
  %1665 = vst.msk [vmem:[%s734 + $0x111] sm:$0xff] %vm402, %v1649
  %v1666 = vld [vmem:[#allocation2] sm:$0xff]
  %v1667 = vld [vmem:[#allocation2 + $0x8] sm:$0x3]
  %v1668 = vld [vmem:[#allocation2 + $0x10] sm:$0xff]
  %v1669 = vld [vmem:[#allocation2 + $0x18] sm:$0x3]
  %v1670 = vld [vmem:[#allocation2 + $0x20] sm:$0xff]
  %v1671 = vld [vmem:[#allocation2 + $0x28] sm:$0x3]
  %v1672 = vld [vmem:[#allocation2 + $0x30] sm:$0xff]
  %v1673 = vld [vmem:[#allocation2 + $0x38] sm:$0x3]
  %v1674 = vld [vmem:[#allocation2 + $0x40] sm:$0xff]
  %v1675 = vld [vmem:[#allocation2 + $0x48] sm:$0x3]
  %v1676 = vld [vmem:[#allocation2 + $0x50] sm:$0xff]
  %v1677 = vld [vmem:[#allocation2 + $0x58] sm:$0x3]
  %v1678 = vld [vmem:[#allocation2 + $0x60] sm:$0xff]
  %v1679 = vld [vmem:[#allocation2 + $0x68] sm:$0x3]
  %v1680 = vld [vmem:[#allocation2 + $0x70] sm:$0xff]
  %v1681 = vld [vmem:[#allocation2 + $0x78] sm:$0x3]
  %v1682 = vld [vmem:[#allocation2 + $0x80] sm:$0xff]
  %v1683 = vld [vmem:[#allocation2 + $0x88] sm:$0x3]
  %v1684 = vld [vmem:[#allocation2 + $0x90] sm:$0xff]
  %v1685 = vld [vmem:[#allocation2 + $0x98] sm:$0x3]
  %v1686 = vld [vmem:[#allocation2 + $0xa0] sm:$0xff]
  %v1687 = vld [vmem:[#allocation2 + $0xa8] sm:$0x3]
  %v1688 = vld [vmem:[#allocation2 + $0xb0] sm:$0xff]
  %v1689 = vld [vmem:[#allocation2 + $0xb8] sm:$0x3]
  %v1690 = vld [vmem:[#allocation2 + $0xc0] sm:$0xff]
  %v1691 = vld [vmem:[#allocation2 + $0xc8] sm:$0x3]
  %v1692 = vld [vmem:[#allocation2 + $0xd0] sm:$0xff]
  %v1693 = vld [vmem:[#allocation2 + $0xd8] sm:$0x3]
  %v1694 = vld [vmem:[#allocation2 + $0xe0] sm:$0xff]
  %v1695 = vld [vmem:[#allocation2 + $0xe8] sm:$0x3]
  %v1696 = vld [vmem:[#allocation2 + $0xf0] sm:$0xff]
  %v1697 = vld [vmem:[#allocation2 + $0xf8] sm:$0x3]
  %v1698 = vld [vmem:[#allocation2 + $0x100] sm:$0xff]
  %v1699 = vld [vmem:[#allocation2 + $0x108] sm:$0x3]
  %v1700 = vld [vmem:[#allocation2 + $0x110] sm:$0xff]
  %v1701 = vld [vmem:[#allocation2 + $0x118] sm:$0x3]
  %v1702 = vld [vmem:[#allocation2 + $0x120] sm:$0xff]
  %v1703 = vld [vmem:[#allocation2 + $0x128] sm:$0x3]
  %v1704 = vld [vmem:[#allocation2 + $0x130] sm:$0xff]
  %v1705 = vld [vmem:[#allocation2 + $0x138] sm:$0x3]
  %v1738 = vrot.slane %v1666, 1
  %v1739 = vrot.slane %v1667, 1
  %v1740 = vsel %vm823, %v1738, %v1739
  %v1741 = vrot.slane %v1668, 1
  %v1742 = vrot.slane %v1669, 1
  %v1743 = vsel %vm823, %v1741, %v1742
  %v1744 = vrot.slane %v1670, 1
  %v1745 = vrot.slane %v1671, 1
  %v1746 = vsel %vm823, %v1744, %v1745
  %v1747 = vrot.slane %v1672, 1
  %v1748 = vrot.slane %v1673, 1
  %v1749 = vsel %vm823, %v1747, %v1748
  %v1750 = vrot.slane %v1674, 1
  %v1751 = vrot.slane %v1675, 1
  %v1752 = vsel %vm823, %v1750, %v1751
  %v1753 = vrot.slane %v1676, 1
  %v1754 = vrot.slane %v1677, 1
  %v1755 = vsel %vm823, %v1753, %v1754
  %v1756 = vrot.slane %v1678, 1
  %v1757 = vrot.slane %v1679, 1
  %v1758 = vsel %vm823, %v1756, %v1757
  %v1759 = vrot.slane %v1680, 1
  %v1760 = vrot.slane %v1681, 1
  %v1761 = vsel %vm823, %v1759, %v1760
  %v1762 = vrot.slane %v1686, 1
  %v1763 = vrot.slane %v1687, 1
  %v1764 = vsel %vm823, %v1762, %v1763
  %v1765 = vrot.slane %v1688, 1
  %v1766 = vrot.slane %v1689, 1
  %v1767 = vsel %vm823, %v1765, %v1766
  %v1768 = vrot.slane %v1690, 1
  %v1769 = vrot.slane %v1691, 1
  %v1770 = vsel %vm823, %v1768, %v1769
  %v1771 = vrot.slane %v1692, 1
  %v1772 = vrot.slane %v1693, 1
  %v1773 = vsel %vm823, %v1771, %v1772
  %v1774 = vrot.slane %v1694, 1
  %v1775 = vrot.slane %v1695, 1
  %v1776 = vsel %vm823, %v1774, %v1775
  %v1777 = vrot.slane %v1696, 1
  %v1778 = vrot.slane %v1697, 1
  %v1779 = vsel %vm823, %v1777, %v1778
  %v1780 = vrot.slane %v1698, 1
  %v1781 = vrot.slane %v1699, 1
  %v1782 = vsel %vm823, %v1780, %v1781
  %v1783 = vrot.slane %v1700, 1
  %v1784 = vrot.slane %v1701, 1
  %v1785 = vsel %vm823, %v1783, %v1784
  %1786 = vrot.lane.b32.xlu0 %v1740, 16
  %v1787 = vpop.permute.xlu0 %1786
  %1788 = vrot.lane.b32.xlu0 %v1743, 16
  %v1789 = vpop.permute.xlu0 %1788
  %1790 = vrot.lane.b32.xlu0 %v1746, 16
  %v1791 = vpop.permute.xlu0 %1790
  %1792 = vrot.lane.b32.xlu0 %v1749, 16
  %v1793 = vpop.permute.xlu0 %1792
  %1794 = vrot.lane.b32.xlu0 %v1752, 16
  %v1795 = vpop.permute.xlu0 %1794
  %1796 = vrot.lane.b32.xlu0 %v1755, 16
  %v1797 = vpop.permute.xlu0 %1796
  %1798 = vrot.lane.b32.xlu0 %v1758, 16
  %v1799 = vpop.permute.xlu0 %1798
  %1800 = vrot.lane.b32.xlu0 %v1761, 16
  %v1801 = vpop.permute.xlu0 %1800
  %1802 = vrot.lane.b32.xlu0 %v1764, 16
  %v1803 = vpop.permute.xlu0 %1802
  %1804 = vrot.lane.b32.xlu0 %v1767, 16
  %v1805 = vpop.permute.xlu0 %1804
  %1806 = vrot.lane.b32.xlu0 %v1770, 16
  %v1807 = vpop.permute.xlu0 %1806
  %1808 = vrot.lane.b32.xlu0 %v1773, 16
  %v1809 = vpop.permute.xlu0 %1808
  %1810 = vrot.lane.b32.xlu0 %v1776, 16
  %v1811 = vpop.permute.xlu0 %1810
  %1812 = vrot.lane.b32.xlu0 %v1779, 16
  %v1813 = vpop.permute.xlu0 %1812
  %1814 = vrot.lane.b32.xlu0 %v1782, 16
  %v1815 = vpop.permute.xlu0 %1814
  %1816 = vrot.lane.b32.xlu0 %v1785, 16
  %v1817 = vpop.permute.xlu0 %1816
  %v1834 = vrot.slane %v1666, 2
  %v1835 = vrot.slane %v1667, 2
  %v1836 = vsel %vm920, %v1834, %v1835
  %v1837 = vrot.slane %v1668, 2
  %v1838 = vrot.slane %v1669, 2
  %v1839 = vsel %vm920, %v1837, %v1838
  %v1840 = vrot.slane %v1670, 2
  %v1841 = vrot.slane %v1671, 2
  %v1842 = vsel %vm920, %v1840, %v1841
  %v1843 = vrot.slane %v1672, 2
  %v1844 = vrot.slane %v1673, 2
  %v1845 = vsel %vm920, %v1843, %v1844
  %v1846 = vrot.slane %v1674, 2
  %v1847 = vrot.slane %v1675, 2
  %v1848 = vsel %vm920, %v1846, %v1847
  %v1849 = vrot.slane %v1676, 2
  %v1850 = vrot.slane %v1677, 2
  %v1851 = vsel %vm920, %v1849, %v1850
  %v1852 = vrot.slane %v1678, 2
  %v1853 = vrot.slane %v1679, 2
  %v1854 = vsel %vm920, %v1852, %v1853
  %v1855 = vrot.slane %v1680, 2
  %v1856 = vrot.slane %v1681, 2
  %v1857 = vsel %vm920, %v1855, %v1856
  %v1858 = vrot.slane %v1686, 2
  %v1859 = vrot.slane %v1687, 2
  %v1860 = vsel %vm920, %v1858, %v1859
  %v1861 = vrot.slane %v1688, 2
  %v1862 = vrot.slane %v1689, 2
  %v1863 = vsel %vm920, %v1861, %v1862
  %v1864 = vrot.slane %v1690, 2
  %v1865 = vrot.slane %v1691, 2
  %v1866 = vsel %vm920, %v1864, %v1865
  %v1867 = vrot.slane %v1692, 2
  %v1868 = vrot.slane %v1693, 2
  %v1869 = vsel %vm920, %v1867, %v1868
  %v1870 = vrot.slane %v1694, 2
  %v1871 = vrot.slane %v1695, 2
  %v1872 = vsel %vm920, %v1870, %v1871
  %v1873 = vrot.slane %v1696, 2
  %v1874 = vrot.slane %v1697, 2
  %v1875 = vsel %vm920, %v1873, %v1874
  %v1876 = vrot.slane %v1698, 2
  %v1877 = vrot.slane %v1699, 2
  %v1878 = vsel %vm920, %v1876, %v1877
  %v1879 = vrot.slane %v1700, 2
  %v1880 = vrot.slane %v1701, 2
  %v1881 = vsel %vm920, %v1879, %v1880
  %1882 = vrot.lane.b32.xlu0 %v1836, 32
  %v1883 = vpop.permute.xlu0 %1882
  %1884 = vrot.lane.b32.xlu0 %v1839, 32
  %v1885 = vpop.permute.xlu0 %1884
  %1886 = vrot.lane.b32.xlu0 %v1842, 32
  %v1887 = vpop.permute.xlu0 %1886
  %1888 = vrot.lane.b32.xlu0 %v1845, 32
  %v1889 = vpop.permute.xlu0 %1888
  %1890 = vrot.lane.b32.xlu0 %v1848, 32
  %v1891 = vpop.permute.xlu0 %1890
  %1892 = vrot.lane.b32.xlu0 %v1851, 32
  %v1893 = vpop.permute.xlu0 %1892
  %1894 = vrot.lane.b32.xlu0 %v1854, 32
  %v1895 = vpop.permute.xlu0 %1894
  %1896 = vrot.lane.b32.xlu0 %v1857, 32
  %v1897 = vpop.permute.xlu0 %1896
  %1898 = vrot.lane.b32.xlu0 %v1860, 32
  %v1899 = vpop.permute.xlu0 %1898
  %1900 = vrot.lane.b32.xlu0 %v1863, 32
  %v1901 = vpop.permute.xlu0 %1900
  %1902 = vrot.lane.b32.xlu0 %v1866, 32
  %v1903 = vpop.permute.xlu0 %1902
  %1904 = vrot.lane.b32.xlu0 %v1869, 32
  %v1905 = vpop.permute.xlu0 %1904
  %1906 = vrot.lane.b32.xlu0 %v1872, 32
  %v1907 = vpop.permute.xlu0 %1906
  %1908 = vrot.lane.b32.xlu0 %v1875, 32
  %v1909 = vpop.permute.xlu0 %1908
  %1910 = vrot.lane.b32.xlu0 %v1878, 32
  %v1911 = vpop.permute.xlu0 %1910
  %1912 = vrot.lane.b32.xlu0 %v1881, 32
  %v1913 = vpop.permute.xlu0 %1912
  %1932 = vrot.lane.b32.xlu0 %v1668, 48
  %v1933 = vpop.permute.xlu0 %1932
  %1934 = vrot.lane.b32.xlu0 %v1670, 48
  %v1935 = vpop.permute.xlu0 %1934
  %1936 = vrot.lane.b32.xlu0 %v1672, 48
  %v1937 = vpop.permute.xlu0 %1936
  %1938 = vrot.lane.b32.xlu0 %v1674, 48
  %v1939 = vpop.permute.xlu0 %1938
  %1940 = vrot.lane.b32.xlu0 %v1676, 48
  %v1941 = vpop.permute.xlu0 %1940
  %1942 = vrot.lane.b32.xlu0 %v1678, 48
  %v1943 = vpop.permute.xlu0 %1942
  %1944 = vrot.lane.b32.xlu0 %v1680, 48
  %v1945 = vpop.permute.xlu0 %1944
  %1946 = vrot.lane.b32.xlu0 %v1682, 48
  %v1947 = vpop.permute.xlu0 %1946
  %1948 = vrot.lane.b32.xlu0 %v1688, 48
  %v1949 = vpop.permute.xlu0 %1948
  %1950 = vrot.lane.b32.xlu0 %v1690, 48
  %v1951 = vpop.permute.xlu0 %1950
  %1952 = vrot.lane.b32.xlu0 %v1692, 48
  %v1953 = vpop.permute.xlu0 %1952
  %1954 = vrot.lane.b32.xlu0 %v1694, 48
  %v1955 = vpop.permute.xlu0 %1954
  %1956 = vrot.lane.b32.xlu0 %v1696, 48
  %v1957 = vpop.permute.xlu0 %1956
  %1958 = vrot.lane.b32.xlu0 %v1698, 48
  %v1959 = vpop.permute.xlu0 %1958
  %1960 = vrot.lane.b32.xlu0 %v1700, 48
  %v1961 = vpop.permute.xlu0 %1960
  %1962 = vrot.lane.b32.xlu0 %v1702, 48
  %v1963 = vpop.permute.xlu0 %1962
  %v1982 = vrot.slane %v1682, 1
  %v1983 = vrot.slane %v1683, 1
  %v1984 = vsel %vm823, %v1982, %v1983
  %v1985 = vrot.slane %v1702, 1
  %v1986 = vrot.slane %v1703, 1
  %v1987 = vsel %vm823, %v1985, %v1986
  %1988 = vrot.lane.b32.xlu0 %v1743, 64
  %v1989 = vpop.permute.xlu0 %1988
  %1990 = vrot.lane.b32.xlu0 %v1746, 64
  %v1991 = vpop.permute.xlu0 %1990
  %1992 = vrot.lane.b32.xlu0 %v1749, 64
  %v1993 = vpop.permute.xlu0 %1992
  %1994 = vrot.lane.b32.xlu0 %v1752, 64
  %v1995 = vpop.permute.xlu0 %1994
  %1996 = vrot.lane.b32.xlu0 %v1755, 64
  %v1997 = vpop.permute.xlu0 %1996
  %1998 = vrot.lane.b32.xlu0 %v1758, 64
  %v1999 = vpop.permute.xlu0 %1998
  %2000 = vrot.lane.b32.xlu0 %v1761, 64
  %v2001 = vpop.permute.xlu0 %2000
  %2002 = vrot.lane.b32.xlu0 %v1984, 64
  %v2003 = vpop.permute.xlu0 %2002
  %2004 = vrot.lane.b32.xlu0 %v1767, 64
  %v2005 = vpop.permute.xlu0 %2004
  %2006 = vrot.lane.b32.xlu0 %v1770, 64
  %v2007 = vpop.permute.xlu0 %2006
  %2008 = vrot.lane.b32.xlu0 %v1773, 64
  %v2009 = vpop.permute.xlu0 %2008
  %2010 = vrot.lane.b32.xlu0 %v1776, 64
  %v2011 = vpop.permute.xlu0 %2010
  %2012 = vrot.lane.b32.xlu0 %v1779, 64
  %v2013 = vpop.permute.xlu0 %2012
  %2014 = vrot.lane.b32.xlu0 %v1782, 64
  %v2015 = vpop.permute.xlu0 %2014
  %2016 = vrot.lane.b32.xlu0 %v1785, 64
  %v2017 = vpop.permute.xlu0 %2016
  %2018 = vrot.lane.b32.xlu0 %v1987, 64
  %v2019 = vpop.permute.xlu0 %2018
  %v2036 = vrot.slane %v1682, 2
  %v2037 = vrot.slane %v1683, 2
  %v2038 = vsel %vm920, %v2036, %v2037
  %v2039 = vrot.slane %v1702, 2
  %v2040 = vrot.slane %v1703, 2
  %v2041 = vsel %vm920, %v2039, %v2040
  %2042 = vrot.lane.b32.xlu0 %v1839, 80
  %v2043 = vpop.permute.xlu0 %2042
  %2044 = vrot.lane.b32.xlu0 %v1842, 80
  %v2045 = vpop.permute.xlu0 %2044
  %2046 = vrot.lane.b32.xlu0 %v1845, 80
  %v2047 = vpop.permute.xlu0 %2046
  %2048 = vrot.lane.b32.xlu0 %v1848, 80
  %v2049 = vpop.permute.xlu0 %2048
  %2050 = vrot.lane.b32.xlu0 %v1851, 80
  %v2051 = vpop.permute.xlu0 %2050
  %2052 = vrot.lane.b32.xlu0 %v1854, 80
  %v2053 = vpop.permute.xlu0 %2052
  %2054 = vrot.lane.b32.xlu0 %v1857, 80
  %v2055 = vpop.permute.xlu0 %2054
  %2056 = vrot.lane.b32.xlu0 %v2038, 80
  %v2057 = vpop.permute.xlu0 %2056
  %2058 = vrot.lane.b32.xlu0 %v1863, 80
  %v2059 = vpop.permute.xlu0 %2058
  %2060 = vrot.lane.b32.xlu0 %v1866, 80
  %v2061 = vpop.permute.xlu0 %2060
  %2062 = vrot.lane.b32.xlu0 %v1869, 80
  %v2063 = vpop.permute.xlu0 %2062
  %2064 = vrot.lane.b32.xlu0 %v1872, 80
  %v2065 = vpop.permute.xlu0 %2064
  %2066 = vrot.lane.b32.xlu0 %v1875, 80
  %v2067 = vpop.permute.xlu0 %2066
  %2068 = vrot.lane.b32.xlu0 %v1878, 80
  %v2069 = vpop.permute.xlu0 %2068
  %2070 = vrot.lane.b32.xlu0 %v1881, 80
  %v2071 = vpop.permute.xlu0 %2070
  %2072 = vrot.lane.b32.xlu0 %v2041, 80
  %v2073 = vpop.permute.xlu0 %2072
  %2092 = vrot.lane.b32.xlu0 %v1670, 96
  %v2093 = vpop.permute.xlu0 %2092
  %2094 = vrot.lane.b32.xlu0 %v1672, 96
  %v2095 = vpop.permute.xlu0 %2094
  %2096 = vrot.lane.b32.xlu0 %v1674, 96
  %v2097 = vpop.permute.xlu0 %2096
  %2098 = vrot.lane.b32.xlu0 %v1676, 96
  %v2099 = vpop.permute.xlu0 %2098
  %2100 = vrot.lane.b32.xlu0 %v1678, 96
  %v2101 = vpop.permute.xlu0 %2100
  %2102 = vrot.lane.b32.xlu0 %v1680, 96
  %v2103 = vpop.permute.xlu0 %2102
  %2104 = vrot.lane.b32.xlu0 %v1682, 96
  %v2105 = vpop.permute.xlu0 %2104
  %2106 = vrot.lane.b32.xlu0 %v1684, 96
  %v2107 = vpop.permute.xlu0 %2106
  %2108 = vrot.lane.b32.xlu0 %v1690, 96
  %v2109 = vpop.permute.xlu0 %2108
  %2110 = vrot.lane.b32.xlu0 %v1692, 96
  %v2111 = vpop.permute.xlu0 %2110
  %2112 = vrot.lane.b32.xlu0 %v1694, 96
  %v2113 = vpop.permute.xlu0 %2112
  %2114 = vrot.lane.b32.xlu0 %v1696, 96
  %v2115 = vpop.permute.xlu0 %2114
  %2116 = vrot.lane.b32.xlu0 %v1698, 96
  %v2117 = vpop.permute.xlu0 %2116
  %2118 = vrot.lane.b32.xlu0 %v1700, 96
  %v2119 = vpop.permute.xlu0 %2118
  %2120 = vrot.lane.b32.xlu0 %v1702, 96
  %v2121 = vpop.permute.xlu0 %2120
  %2122 = vrot.lane.b32.xlu0 %v1704, 96
  %v2123 = vpop.permute.xlu0 %2122
  %v2142 = vrot.slane %v1684, 1
  %v2143 = vrot.slane %v1685, 1
  %v2144 = vsel %vm823, %v2142, %v2143
  %v2145 = vrot.slane %v1704, 1
  %v2146 = vrot.slane %v1705, 1
  %v2147 = vsel %vm823, %v2145, %v2146
  %2148 = vrot.lane.b32.xlu0 %v1746, 112
  %v2149 = vpop.permute.xlu0 %2148
  %2150 = vrot.lane.b32.xlu0 %v1749, 112
  %v2151 = vpop.permute.xlu0 %2150
  %2152 = vrot.lane.b32.xlu0 %v1752, 112
  %v2153 = vpop.permute.xlu0 %2152
  %2154 = vrot.lane.b32.xlu0 %v1755, 112
  %v2155 = vpop.permute.xlu0 %2154
  %2156 = vrot.lane.b32.xlu0 %v1758, 112
  %v2157 = vpop.permute.xlu0 %2156
  %2158 = vrot.lane.b32.xlu0 %v1761, 112
  %v2159 = vpop.permute.xlu0 %2158
  %2160 = vrot.lane.b32.xlu0 %v1984, 112
  %v2161 = vpop.permute.xlu0 %2160
  %2162 = vrot.lane.b32.xlu0 %v2144, 112
  %v2163 = vpop.permute.xlu0 %2162
  %2164 = vrot.lane.b32.xlu0 %v1770, 112
  %v2165 = vpop.permute.xlu0 %2164
  %2166 = vrot.lane.b32.xlu0 %v1773, 112
  %v2167 = vpop.permute.xlu0 %2166
  %2168 = vrot.lane.b32.xlu0 %v1776, 112
  %v2169 = vpop.permute.xlu0 %2168
  %2170 = vrot.lane.b32.xlu0 %v1779, 112
  %v2171 = vpop.permute.xlu0 %2170
  %2172 = vrot.lane.b32.xlu0 %v1782, 112
  %v2173 = vpop.permute.xlu0 %2172
  %2174 = vrot.lane.b32.xlu0 %v1785, 112
  %v2175 = vpop.permute.xlu0 %2174
  %2176 = vrot.lane.b32.xlu0 %v1987, 112
  %v2177 = vpop.permute.xlu0 %2176
  %2178 = vrot.lane.b32.xlu0 %v2147, 112
  %v2179 = vpop.permute.xlu0 %2178
  %v2196 = vrot.slane %v1684, 2
  %v2197 = vrot.slane %v1685, 2
  %v2198 = vsel %vm920, %v2196, %v2197
  %v2199 = vrot.slane %v1704, 2
  %v2200 = vrot.slane %v1705, 2
  %v2201 = vsel %vm920, %v2199, %v2200
  %v2218 = vsel %vm402, %v1666, %v1787
  %v2219 = vsel %vm402, %v1668, %v1789
  %v2220 = vsel %vm402, %v1670, %v1791
  %v2221 = vsel %vm402, %v1672, %v1793
  %v2222 = vsel %vm402, %v1674, %v1795
  %v2223 = vsel %vm402, %v1676, %v1797
  %v2224 = vsel %vm402, %v1678, %v1799
  %v2225 = vsel %vm402, %v1680, %v1801
  %v2226 = vsel %vm402, %v1686, %v1803
  %v2227 = vsel %vm402, %v1688, %v1805
  %v2228 = vsel %vm402, %v1690, %v1807
  %v2229 = vsel %vm402, %v1692, %v1809
  %v2230 = vsel %vm402, %v1694, %v1811
  %v2231 = vsel %vm402, %v1696, %v1813
  %v2232 = vsel %vm402, %v1698, %v1815
  %v2233 = vsel %vm402, %v1700, %v1817
  %v2234 = vsel %vm451, %v2218, %v1883
  %v2235 = vsel %vm451, %v2219, %v1885
  %v2236 = vsel %vm451, %v2220, %v1887
  %v2237 = vsel %vm451, %v2221, %v1889
  %v2238 = vsel %vm451, %v2222, %v1891
  %v2239 = vsel %vm451, %v2223, %v1893
  %v2240 = vsel %vm451, %v2224, %v1895
  %v2241 = vsel %vm451, %v2225, %v1897
  %v2242 = vsel %vm451, %v2226, %v1899
  %v2243 = vsel %vm451, %v2227, %v1901
  %v2244 = vsel %vm451, %v2228, %v1903
  %v2245 = vsel %vm451, %v2229, %v1905
  %v2246 = vsel %vm451, %v2230, %v1907
  %v2247 = vsel %vm451, %v2231, %v1909
  %v2248 = vsel %vm451, %v2232, %v1911
  %v2249 = vsel %vm451, %v2233, %v1913
  %v2250 = vsel %vm484, %v2234, %v1933
  %v2251 = vsel %vm484, %v2235, %v1935
  %v2252 = vsel %vm484, %v2236, %v1937
  %v2253 = vsel %vm484, %v2237, %v1939
  %v2254 = vsel %vm484, %v2238, %v1941
  %v2255 = vsel %vm484, %v2239, %v1943
  %v2256 = vsel %vm484, %v2240, %v1945
  %v2257 = vsel %vm484, %v2241, %v1947
  %v2258 = vsel %vm484, %v2242, %v1949
  %v2259 = vsel %vm484, %v2243, %v1951
  %v2260 = vsel %vm484, %v2244, %v1953
  %v2261 = vsel %vm484, %v2245, %v1955
  %v2262 = vsel %vm484, %v2246, %v1957
  %v2263 = vsel %vm484, %v2247, %v1959
  %v2264 = vsel %vm484, %v2248, %v1961
  %v2265 = vsel %vm484, %v2249, %v1963
  %v2266 = vsel %vm593, %v2250, %v1989
  %v2267 = vsel %vm593, %v2251, %v1991
  %v2268 = vsel %vm593, %v2252, %v1993
  %v2269 = vsel %vm593, %v2253, %v1995
  %v2270 = vsel %vm593, %v2254, %v1997
  %v2271 = vsel %vm593, %v2255, %v1999
  %v2272 = vsel %vm593, %v2256, %v2001
  %v2273 = vsel %vm593, %v2257, %v2003
  %v2274 = vsel %vm593, %v2258, %v2005
  %v2275 = vsel %vm593, %v2259, %v2007
  %v2276 = vsel %vm593, %v2260, %v2009
  %v2277 = vsel %vm593, %v2261, %v2011
  %v2278 = vsel %vm593, %v2262, %v2013
  %v2279 = vsel %vm593, %v2263, %v2015
  %v2280 = vsel %vm593, %v2264, %v2017
  %v2281 = vsel %vm593, %v2265, %v2019
  %v2282 = vsel %vm1369, %v2266, %v2043
  %v2283 = vsel %vm1369, %v2267, %v2045
  %v2284 = vsel %vm1369, %v2268, %v2047
  %v2285 = vsel %vm1369, %v2269, %v2049
  %v2286 = vsel %vm1369, %v2270, %v2051
  %v2287 = vsel %vm1369, %v2271, %v2053
  %v2288 = vsel %vm1369, %v2272, %v2055
  %v2289 = vsel %vm1369, %v2273, %v2057
  %v2290 = vsel %vm1369, %v2274, %v2059
  %v2291 = vsel %vm1369, %v2275, %v2061
  %v2292 = vsel %vm1369, %v2276, %v2063
  %v2293 = vsel %vm1369, %v2277, %v2065
  %v2294 = vsel %vm1369, %v2278, %v2067
  %v2295 = vsel %vm1369, %v2279, %v2069
  %v2296 = vsel %vm1369, %v2280, %v2071
  %v2297 = vsel %vm1369, %v2281, %v2073
  %v2298 = vsel %vm1386, %v2282, %v2093
  %v2299 = vsel %vm1386, %v2283, %v2095
  %v2300 = vsel %vm1386, %v2284, %v2097
  %v2301 = vsel %vm1386, %v2285, %v2099
  %v2302 = vsel %vm1386, %v2286, %v2101
  %v2303 = vsel %vm1386, %v2287, %v2103
  %v2304 = vsel %vm1386, %v2288, %v2105
  %v2305 = vsel %vm1386, %v2289, %v2107
  %v2306 = vsel %vm1386, %v2290, %v2109
  %v2307 = vsel %vm1386, %v2291, %v2111
  %v2308 = vsel %vm1386, %v2292, %v2113
  %v2309 = vsel %vm1386, %v2293, %v2115
  %v2310 = vsel %vm1386, %v2294, %v2117
  %v2311 = vsel %vm1386, %v2295, %v2119
  %v2312 = vsel %vm1386, %v2296, %v2121
  %v2313 = vsel %vm1386, %v2297, %v2123
  %v2314 = vsel %vm1403, %v2298, %v2149
  %v2315 = vsel %vm1403, %v2299, %v2151
  %v2316 = vsel %vm1403, %v2300, %v2153
  %v2317 = vsel %vm1403, %v2301, %v2155
  %v2318 = vsel %vm1403, %v2302, %v2157
  %v2319 = vsel %vm1403, %v2303, %v2159
  %v2320 = vsel %vm1403, %v2304, %v2161
  %v2321 = vsel %vm1403, %v2305, %v2163
  %v2322 = vsel %vm1403, %v2306, %v2165
  %v2323 = vsel %vm1403, %v2307, %v2167
  %v2324 = vsel %vm1403, %v2308, %v2169
  %v2325 = vsel %vm1403, %v2309, %v2171
  %v2326 = vsel %vm1403, %v2310, %v2173
  %v2327 = vsel %vm1403, %v2311, %v2175
  %v2328 = vsel %vm1403, %v2312, %v2177
  %v2329 = vsel %vm1403, %v2313, %v2179
  %v2330 = vpack.c.bf16 %v2315, %v2314
  %v2331 = vpack.c.bf16 %v1845, %v1842
  %v2332 = vpack.c.bf16 %v2317, %v2316
  %v2333 = vpack.c.bf16 %v1851, %v1848
  %v2334 = vpack.c.bf16 %v2319, %v2318
  %v2335 = vpack.c.bf16 %v1857, %v1854
  %v2336 = vpack.c.bf16 %v2321, %v2320
  %v2337 = vpack.c.bf16 %v2198, %v2038
  %v2338 = vpack.c.bf16 %v2323, %v2322
  %v2339 = vpack.c.bf16 %v1869, %v1866
  %v2340 = vpack.c.bf16 %v2325, %v2324
  %v2341 = vpack.c.bf16 %v1875, %v1872
  %v2342 = vpack.c.bf16 %v2327, %v2326
  %v2343 = vpack.c.bf16 %v1881, %v1878
  %v2344 = vpack.c.bf16 %v2329, %v2328
  %v2345 = vpack.c.bf16 %v2201, %v2041
  %v2346 = vld [vmem:[%s5] sm:$0xf]
  %v2347 = vld [vmem:[%s5 + $0x4] sm:$0xf]
  %v2348 = vld [vmem:[%s5 + $0x8] sm:$0xf]
  %v2349 = vld [vmem:[%s5 + $0xc] sm:$0xf]
  %v2350 = vld [vmem:[%s5 + $0x10] sm:$0xf]
  %v2351 = vld [vmem:[%s5 + $0x14] sm:$0xf]
  %v2352 = vld [vmem:[%s5 + $0x18] sm:$0xf]
  %v2353 = vld [vmem:[%s5 + $0x1c] sm:$0xf]
  %v2354 = vld [vmem:[%s5 + $0x20] sm:$0xf]
  %v2355 = vld [vmem:[%s5 + $0x24] sm:$0xf]
  %v2356 = vld [vmem:[%s5 + $0x28] sm:$0xf]
  %v2357 = vld [vmem:[%s5 + $0x2c] sm:$0xf]
  %v2358 = vld [vmem:[%s5 + $0x30] sm:$0xf]
  %v2359 = vld [vmem:[%s5 + $0x34] sm:$0xf]
  %v2360 = vld [vmem:[%s5 + $0x38] sm:$0xf]
  %v2361 = vld [vmem:[%s5 + $0x3c] sm:$0xf]
  %v2362 = vld [vmem:[%s5 + $0x40] sm:$0xf]
  %v2363 = vld [vmem:[%s5 + $0x44] sm:$0xf]
  %v2364 = vld [vmem:[%s6] sm:$0x1]
  %v2366 = vperm.slane %v2364, 0
  %v2386 = vunpack.c.l.b16 %v2346
  %v2387 = vunpack.c.l.b16 %v2347
  %v2388 = vunpack.c.l.b16 %v2348
  %v2389 = vunpack.c.l.b16 %v2349
  %v2390 = vunpack.c.l.b16 %v2350
  %v2391 = vunpack.c.l.b16 %v2351
  %v2392 = vunpack.c.l.b16 %v2352
  %v2393 = vunpack.c.l.b16 %v2353
  %v2394 = vunpack.c.l.b16 %v2354
  %v2395 = vunpack.c.l.b16 %v2355
  %v2396 = vunpack.c.l.b16 %v2356
  %v2397 = vunpack.c.l.b16 %v2357
  %v2398 = vunpack.c.l.b16 %v2358
  %v2399 = vunpack.c.l.b16 %v2359
  %v2400 = vunpack.c.l.b16 %v2360
  %v2401 = vunpack.c.l.b16 %v2361
  %v2402 = vunpack.c.l.b16 %v2362
  %v2403 = vunpack.c.l.b16 %v2363
  %v2404 = vpack.c.b16 %v2387, %v2386
  %v2405 = vpack.c.b16 %v2389, %v2388
  %v2406 = vpack.c.b16 %v2391, %v2390
  %v2407 = vpack.c.b16 %v2393, %v2392
  %v2408 = vpack.c.b16 %v2395, %v2394
  %v2409 = vpack.c.b16 %v2397, %v2396
  %v2410 = vpack.c.b16 %v2399, %v2398
  %v2411 = vpack.c.b16 %v2401, %v2400
  %v2412 = vpack.c.b16 %v2403, %v2402
  %v2423 = vsel %vm402, %v2331, 0
  %v2426 = vsel %vm402, %v2333, 0
  %v2429 = vsel %vm402, %v2335, 0
  %v2432 = vsel %vm402, %v2337, 0
  %v2435 = vsel %vm402, %v2339, 0
  %v2438 = vsel %vm402, %v2341, 0
  %v2441 = vsel %vm402, %v2343, 0
  %v2444 = vsel %vm402, %v2345, 0
  %2446 = vmatpush.bf16.msra.mxu0 %v2411
  %2447 = vmatpush.bf16.msra.mxu0 %v2410
  %2448 = vmatpush.bf16.msra.mxu0 %v2409
  %2449 = vmatpush.bf16.msra.mxu0 %v2408
  %2450 = vmatpush.bf16.msra.mxu0 %v2407
  %2451 = vmatpush.bf16.msra.mxu0 %v2406
  %2452 = vmatpush.bf16.msra.mxu0 %v2405
  %2453 = vmatpush.bf16.msra.mxu0 %v2404
  %2454 = vmatmul.bf16.gmra.mxu0 %v2330
  %v2455 = vpop.f32.mrf.mxu0
  %v2456 = vadd.f32 %v2366, %v2455
  %v2457 = vpop.f32.mrf.mxu0
  %v2458 = vadd.f32 %v2366, %v2457
  %2459 = vmatmul.bf16.gmra.mxu0 %v2332
  %v2460 = vpop.f32.mrf.mxu0
  %v2461 = vadd.f32 %v2366, %v2460
  %v2462 = vpop.f32.mrf.mxu0
  %v2463 = vadd.f32 %v2366, %v2462
  %2464 = vmatmul.bf16.gmra.mxu0 %v2334
  %v2465 = vpop.f32.mrf.mxu0
  %v2466 = vadd.f32 %v2366, %v2465
  %v2467 = vpop.f32.mrf.mxu0
  %v2468 = vadd.f32 %v2366, %v2467
  %2469 = vmatmul.bf16.gmra.mxu0 %v2336
  %v2470 = vpop.f32.mrf.mxu0
  %v2471 = vadd.f32 %v2366, %v2470
  %v2472 = vpop.f32.mrf.mxu0
  %v2473 = vadd.f32 %v2366, %v2472
  %2474 = vmatmul.bf16.gmra.mxu0 %v2338
  %v2475 = vpop.f32.mrf.mxu0
  %v2476 = vadd.f32 %v2366, %v2475
  %v2477 = vpop.f32.mrf.mxu0
  %v2478 = vadd.f32 %v2366, %v2477
  %2479 = vmatmul.bf16.gmra.mxu0 %v2340
  %v2480 = vpop.f32.mrf.mxu0
  %v2481 = vadd.f32 %v2366, %v2480
  %v2482 = vpop.f32.mrf.mxu0
  %v2483 = vadd.f32 %v2366, %v2482
  %2484 = vmatmul.bf16.gmra.mxu0 %v2342
  %v2485 = vpop.f32.mrf.mxu0
  %v2486 = vadd.f32 %v2366, %v2485
  %v2487 = vpop.f32.mrf.mxu0
  %v2488 = vadd.f32 %v2366, %v2487
  %2489 = vmatmul.bf16.gmra.mxu0 %v2344
  %v2490 = vpop.f32.mrf.mxu0
  %v2491 = vadd.f32 %v2366, %v2490
  %v2492 = vpop.f32.mrf.mxu0
  %v2493 = vadd.f32 %v2366, %v2492
  %2494 = vdwg.mxu0
  %2495 = vmatpush.bf16.msra.mxu0 0
  %2496 = vmatpush.bf16.msra.mxu0 0
  %2497 = vmatpush.bf16.msra.mxu0 0
  %2498 = vmatpush.bf16.msra.mxu0 0
  %2499 = vmatpush.bf16.msra.mxu0 0
  %2500 = vmatpush.bf16.msra.mxu0 0
  %2501 = vmatpush.bf16.msra.mxu0 0
  %2502 = vmatpush.bf16.msra.mxu0 %v2412
  %2503 = vmatmul.bf16.gmra.mxu0 %v2423
  %v2504 = vpop.f32.mrf.mxu0
  %v2505 = vadd.f32 %v2456, %v2504
  %v2506 = vpop.f32.mrf.mxu0
  %v2507 = vadd.f32 %v2458, %v2506
  %2508 = vmatmul.bf16.gmra.mxu0 %v2426
  %v2509 = vpop.f32.mrf.mxu0
  %v2510 = vadd.f32 %v2461, %v2509
  %v2511 = vpop.f32.mrf.mxu0
  %v2512 = vadd.f32 %v2463, %v2511
  %2513 = vmatmul.bf16.gmra.mxu0 %v2429
  %v2514 = vpop.f32.mrf.mxu0
  %v2515 = vadd.f32 %v2466, %v2514
  %v2516 = vpop.f32.mrf.mxu0
  %v2517 = vadd.f32 %v2468, %v2516
  %2518 = vmatmul.bf16.gmra.mxu0 %v2432
  %v2519 = vpop.f32.mrf.mxu0
  %v2520 = vadd.f32 %v2471, %v2519
  %v2521 = vpop.f32.mrf.mxu0
  %v2522 = vadd.f32 %v2473, %v2521
  %2523 = vmatmul.bf16.gmra.mxu0 %v2435
  %v2524 = vpop.f32.mrf.mxu0
  %v2525 = vadd.f32 %v2476, %v2524
  %v2526 = vpop.f32.mrf.mxu0
  %v2527 = vadd.f32 %v2478, %v2526
  %2528 = vmatmul.bf16.gmra.mxu0 %v2438
  %v2529 = vpop.f32.mrf.mxu0
  %v2530 = vadd.f32 %v2481, %v2529
  %v2531 = vpop.f32.mrf.mxu0
  %v2532 = vadd.f32 %v2483, %v2531
  %2533 = vmatmul.bf16.gmra.mxu0 %v2441
  %v2534 = vpop.f32.mrf.mxu0
  %v2535 = vadd.f32 %v2486, %v2534
  %v2536 = vpop.f32.mrf.mxu0
  %v2537 = vadd.f32 %v2488, %v2536
  %2538 = vmatmul.bf16.gmra.mxu0 %v2444
  %v2539 = vpop.f32.mrf.mxu0
  %v2540 = vadd.f32 %v2491, %v2539
  %v2541 = vpop.f32.mrf.mxu0
  %v2542 = vadd.f32 %v2493, %v2541
  %2543 = vdwg.mxu0
  %v2544 = vadd.f32 %v2505, %v667
  %v2545 = vadd.f32 %v2507, %v668
  %v2546 = vadd.f32 %v2510, %v669
  %v2547 = vadd.f32 %v2512, %v670
  %v2548 = vadd.f32 %v2515, %v671
  %v2549 = vadd.f32 %v2517, %v672
  %v2550 = vadd.f32 %v2520, %v673
  %v2551 = vadd.f32 %v2522, %v674
  %v2552 = vadd.f32 %v2525, %v675
  %v2553 = vadd.f32 %v2527, %v676
  %v2554 = vadd.f32 %v2530, %v677
  %v2555 = vadd.f32 %v2532, %v678
  %v2556 = vadd.f32 %v2535, %v679
  %v2557 = vadd.f32 %v2537, %v680
  %v2558 = vadd.f32 %v2540, %v681
  %v2559 = vadd.f32 %v2542, %v682
  %v2560 = vmax.f32 %v2544, 0.0
  %v2561 = vmax.f32 %v2545, 0.0
  %v2562 = vmax.f32 %v2546, 0.0
  %v2563 = vmax.f32 %v2547, 0.0
  %v2564 = vmax.f32 %v2548, 0.0
  %v2565 = vmax.f32 %v2549, 0.0
  %v2566 = vmax.f32 %v2550, 0.0
  %v2567 = vmax.f32 %v2551, 0.0
  %v2568 = vmax.f32 %v2552, 0.0
  %v2569 = vmax.f32 %v2553, 0.0
  %v2570 = vmax.f32 %v2554, 0.0
  %v2571 = vmax.f32 %v2555, 0.0
  %v2572 = vmax.f32 %v2556, 0.0
  %v2573 = vmax.f32 %v2557, 0.0
  %v2574 = vmax.f32 %v2558, 0.0
  %v2575 = vmax.f32 %v2559, 0.0
  %v2576 = vpack.c.bf16 %v2561, %v2560
  %v2577 = vpack.c.bf16 %v2563, %v2562
  %v2578 = vpack.c.bf16 %v2565, %v2564
  %v2579 = vpack.c.bf16 %v2567, %v2566
  %v2580 = vpack.c.bf16 %v2569, %v2568
  %v2581 = vpack.c.bf16 %v2571, %v2570
  %v2582 = vpack.c.bf16 %v2573, %v2572
  %v2583 = vpack.c.bf16 %v2575, %v2574
  %v2584 = vld [vmem:[%s7] sm:$0xf]
  %v2585 = vld [vmem:[%s7 + $0x4] sm:$0xf]
  %v2586 = vld [vmem:[#allocation3] sm:$0x1]
  %v2588 = vperm.slane %v2586, 0
  %v2592 = vunpack.c.l.b16 %v2584
  %v2593 = vunpack.c.l.b16 %v2585
  %v2594 = vpack.c.b16 %v2593, %v2592
  %v2597 = vsel %vm402, %v2576, 0
  %v2600 = vsel %vm402, %v2577, 0
  %v2603 = vsel %vm402, %v2578, 0
  %v2606 = vsel %vm402, %v2579, 0
  %v2609 = vsel %vm402, %v2580, 0
  %v2612 = vsel %vm402, %v2581, 0
  %v2615 = vsel %vm402, %v2582, 0
  %v2618 = vsel %vm402, %v2583, 0
  %2620 = vmatpush.bf16.msra.mxu0 0
  %2621 = vmatpush.bf16.msra.mxu0 0
  %2622 = vmatpush.bf16.msra.mxu0 0
  %2623 = vmatpush.bf16.msra.mxu0 0
  %2624 = vmatpush.bf16.msra.mxu0 0
  %2625 = vmatpush.bf16.msra.mxu0 0
  %2626 = vmatpush.bf16.msra.mxu0 0
  %2627 = vmatpush.bf16.msra.mxu0 %v2594
  %2628 = vmatmul.bf16.gmra.mxu0 %v2597
  %v2629 = vpop.f32.mrf.mxu0
  %v2630 = vadd.f32 %v2588, %v2629
  %v2631 = vpop.f32.mrf.mxu0
  %v2632 = vadd.f32 %v2588, %v2631
  %2633 = vmatmul.bf16.gmra.mxu0 %v2600
  %v2634 = vpop.f32.mrf.mxu0
  %v2635 = vadd.f32 %v2588, %v2634
  %v2636 = vpop.f32.mrf.mxu0
  %v2637 = vadd.f32 %v2588, %v2636
  %2638 = vmatmul.bf16.gmra.mxu0 %v2603
  %v2639 = vpop.f32.mrf.mxu0
  %v2640 = vadd.f32 %v2588, %v2639
  %v2641 = vpop.f32.mrf.mxu0
  %v2642 = vadd.f32 %v2588, %v2641
  %2643 = vmatmul.bf16.gmra.mxu0 %v2606
  %v2644 = vpop.f32.mrf.mxu0
  %v2645 = vadd.f32 %v2588, %v2644
  %v2646 = vpop.f32.mrf.mxu0
  %v2647 = vadd.f32 %v2588, %v2646
  %2648 = vmatmul.bf16.gmra.mxu0 %v2609
  %v2649 = vpop.f32.mrf.mxu0
  %v2650 = vadd.f32 %v2588, %v2649
  %v2651 = vpop.f32.mrf.mxu0
  %v2652 = vadd.f32 %v2588, %v2651
  %2653 = vmatmul.bf16.gmra.mxu0 %v2612
  %v2654 = vpop.f32.mrf.mxu0
  %v2655 = vadd.f32 %v2588, %v2654
  %v2656 = vpop.f32.mrf.mxu0
  %v2657 = vadd.f32 %v2588, %v2656
  %2658 = vmatmul.bf16.gmra.mxu0 %v2615
  %v2659 = vpop.f32.mrf.mxu0
  %v2660 = vadd.f32 %v2588, %v2659
  %v2661 = vpop.f32.mrf.mxu0
  %v2662 = vadd.f32 %v2588, %v2661
  %2663 = vmatmul.bf16.gmra.mxu0 %v2618
  %v2664 = vpop.f32.mrf.mxu0
  %v2665 = vadd.f32 %v2588, %v2664
  %v2666 = vpop.f32.mrf.mxu0
  %v2667 = vadd.f32 %v2588, %v2666
  %2668 = vdwg.mxu0
  %v2669 = vpack.c.bf16 %v2632, %v2630
  %v2670 = vpack.c.bf16 %v2637, %v2635
  %v2671 = vpack.c.bf16 %v2642, %v2640
  %v2672 = vpack.c.bf16 %v2647, %v2645
  %v2673 = vpack.c.bf16 %v2652, %v2650
  %v2674 = vpack.c.bf16 %v2657, %v2655
  %v2675 = vpack.c.bf16 %v2662, %v2660
  %v2676 = vpack.c.bf16 %v2667, %v2665
  %v2677 = vld [vmem:[%s9] sm:$0xff]
  %v2678 = vld [vmem:[%s9 + $0x8] sm:$0xff]
  %v2679 = vld [vmem:[%s9 + $0x10] sm:$0xff]
  %v2680 = vld [vmem:[%s9 + $0x18] sm:$0xff]
  %v2681 = vld [vmem:[%s9 + $0x20] sm:$0xff]
  %v2682 = vld [vmem:[%s9 + $0x28] sm:$0xff]
  %v2683 = vld [vmem:[%s9 + $0x30] sm:$0xff]
  %v2684 = vld [vmem:[%s9 + $0x38] sm:$0xff]
  %v2693 = vunpack.c.l.b16 %v2669
  %v2694 = vunpack.c.h.b16 %v2669
  %v2695 = vunpack.c.l.b16 %v2670
  %v2696 = vunpack.c.h.b16 %v2670
  %v2697 = vunpack.c.l.b16 %v2671
  %v2698 = vunpack.c.h.b16 %v2671
  %v2699 = vunpack.c.l.b16 %v2672
  %v2700 = vunpack.c.h.b16 %v2672
  %v2701 = vunpack.c.l.b16 %v2673
  %v2702 = vunpack.c.h.b16 %v2673
  %v2703 = vunpack.c.l.b16 %v2674
  %v2704 = vunpack.c.h.b16 %v2674
  %v2705 = vunpack.c.l.b16 %v2675
  %v2706 = vunpack.c.h.b16 %v2675
  %v2707 = vunpack.c.l.b16 %v2676
  %v2708 = vunpack.c.h.b16 %v2676
  %2709 = vset.pattern.permute.xlu0 0
  %2710 = vperm.xlu0 %2709, %v2693
  %v2711 = vpop.permute.xlu0 %2710
  %2712 = vset.pattern.permute.xlu0 0
  %2713 = vperm.xlu0 %2712, %v2694
  %v2714 = vpop.permute.xlu0 %2713
  %2715 = vset.pattern.permute.xlu0 0
  %2716 = vperm.xlu0 %2715, %v2695
  %v2717 = vpop.permute.xlu0 %2716
  %2718 = vset.pattern.permute.xlu0 0
  %2719 = vperm.xlu0 %2718, %v2696
  %v2720 = vpop.permute.xlu0 %2719
  %2721 = vset.pattern.permute.xlu0 0
  %2722 = vperm.xlu0 %2721, %v2697
  %v2723 = vpop.permute.xlu0 %2722
  %2724 = vset.pattern.permute.xlu0 0
  %2725 = vperm.xlu0 %2724, %v2698
  %v2726 = vpop.permute.xlu0 %2725
  %2727 = vset.pattern.permute.xlu0 0
  %2728 = vperm.xlu0 %2727, %v2699
  %v2729 = vpop.permute.xlu0 %2728
  %2730 = vset.pattern.permute.xlu0 0
  %2731 = vperm.xlu0 %2730, %v2700
  %v2732 = vpop.permute.xlu0 %2731
  %2733 = vset.pattern.permute.xlu0 0
  %2734 = vperm.xlu0 %2733, %v2701
  %v2735 = vpop.permute.xlu0 %2734
  %2736 = vset.pattern.permute.xlu0 0
  %2737 = vperm.xlu0 %2736, %v2702
  %v2738 = vpop.permute.xlu0 %2737
  %2739 = vset.pattern.permute.xlu0 0
  %2740 = vperm.xlu0 %2739, %v2703
  %v2741 = vpop.permute.xlu0 %2740
  %2742 = vset.pattern.permute.xlu0 0
  %2743 = vperm.xlu0 %2742, %v2704
  %v2744 = vpop.permute.xlu0 %2743
  %2745 = vset.pattern.permute.xlu0 0
  %2746 = vperm.xlu0 %2745, %v2705
  %v2747 = vpop.permute.xlu0 %2746
  %2748 = vset.pattern.permute.xlu0 0
  %2749 = vperm.xlu0 %2748, %v2706
  %v2750 = vpop.permute.xlu0 %2749
  %2751 = vset.pattern.permute.xlu0 0
  %2752 = vperm.xlu0 %2751, %v2707
  %v2753 = vpop.permute.xlu0 %2752
  %2754 = vset.pattern.permute.xlu0 0
  %2755 = vperm.xlu0 %2754, %v2708
  %v2756 = vpop.permute.xlu0 %2755
  %v2757 = vlaneseq
  %v2758 = vand.u32 %v2757, 127
  %v2759 = vperm.slane %v2711, %v2758
  %v2760 = vadd.s32 %v2758, 4294967288
  %v2761 = vperm.slane %v2714, %v2760
  %vm2762 = vcmask 130112
  %v2763 = vsel %vm2762, %v2761, %v2759
  %v2764 = vadd.s32 %v2758, 4294967280
  %v2765 = vperm.slane %v2717, %v2764
  %vm2766 = vcmask 195712
  %v2767 = vsel %vm2766, %v2765, %v2763
  %v2768 = vadd.s32 %v2758, 4294967272
  %v2769 = vperm.slane %v2720, %v2768
  %vm2770 = vcmask 261312
  %v2771 = vsel %vm2770, %v2769, %v2767
  %v2772 = vadd.s32 %v2758, 4294967264
  %v2773 = vperm.slane %v2723, %v2772
  %vm2774 = vcmask 326912
  %v2775 = vsel %vm2774, %v2773, %v2771
  %v2776 = vadd.s32 %v2758, 4294967256
  %v2777 = vperm.slane %v2726, %v2776
  %vm2778 = vcmask 392512
  %v2779 = vsel %vm2778, %v2777, %v2775
  %v2780 = vadd.s32 %v2758, 4294967248
  %v2781 = vperm.slane %v2729, %v2780
  %vm2782 = vcmask 458112
  %v2783 = vsel %vm2782, %v2781, %v2779
  %v2784 = vadd.s32 %v2758, 4294967240
  %v2785 = vperm.slane %v2732, %v2784
  %vm2786 = vcmask 523712
  %v2787 = vsel %vm2786, %v2785, %v2783
  %v2788 = vperm.slane %v2735, %v2758
  %v2789 = vperm.slane %v2738, %v2760
  %v2790 = vsel %vm2762, %v2789, %v2788
  %v2791 = vperm.slane %v2741, %v2764
  %v2792 = vsel %vm2766, %v2791, %v2790
  %v2793 = vperm.slane %v2744, %v2768
  %v2794 = vsel %vm2770, %v2793, %v2792
  %v2795 = vperm.slane %v2747, %v2772
  %v2796 = vsel %vm2774, %v2795, %v2794
  %v2797 = vperm.slane %v2750, %v2776
  %v2798 = vsel %vm2778, %v2797, %v2796
  %v2799 = vperm.slane %v2753, %v2780
  %v2800 = vsel %vm2782, %v2799, %v2798
  %v2801 = vperm.slane %v2756, %v2784
  %v2802 = vsel %vm2786, %v2801, %v2800
  %vm2803 = vcmask 1041409
  %v2804 = vsel %vm2803, %v2802, %v2787
  %v2805 = vpack.c.b16 %v2804, %v2804
  %v2814 = vunpack.c.l.b16 %v2677
  %v2815 = vunpack.c.h.b16 %v2677
  %v2816 = vunpack.c.l.b16 %v2678
  %v2817 = vunpack.c.h.b16 %v2678
  %v2818 = vunpack.c.l.b16 %v2679
  %v2819 = vunpack.c.h.b16 %v2679
  %v2820 = vunpack.c.l.b16 %v2680
  %v2821 = vunpack.c.h.b16 %v2680
  %v2822 = vunpack.c.l.b16 %v2681
  %v2823 = vunpack.c.h.b16 %v2681
  %v2824 = vunpack.c.l.b16 %v2682
  %v2825 = vunpack.c.h.b16 %v2682
  %v2826 = vunpack.c.l.b16 %v2683
  %v2827 = vunpack.c.h.b16 %v2683
  %v2828 = vunpack.c.l.b16 %v2684
  %v2829 = vunpack.c.h.b16 %v2684
  %v2830 = vpack.c.b16 %v2816, %v2814
  %v2831 = vpack.c.b16 %v2817, %v2815
  %v2832 = vpack.c.b16 %v2820, %v2818
  %v2833 = vpack.c.b16 %v2821, %v2819
  %v2834 = vpack.c.b16 %v2824, %v2822
  %v2835 = vpack.c.b16 %v2825, %v2823
  %v2836 = vpack.c.b16 %v2828, %v2826
  %v2837 = vpack.c.b16 %v2829, %v2827
  %v2847 = vsel %vm593, %v2805, 0
  %2849 = vmatpush.bf16.msra.mxu0 0
  %2850 = vmatpush.bf16.msra.mxu0 0
  %2851 = vmatpush.bf16.msra.mxu0 0
  %2852 = vmatpush.bf16.msra.mxu0 0
  %2853 = vmatpush.bf16.msra.mxu0 %v2836
  %2854 = vmatpush.bf16.msra.mxu0 %v2834
  %2855 = vmatpush.bf16.msra.mxu0 %v2832
  %2856 = vmatpush.bf16.msra.mxu0 %v2830
  %2857 = vmatmul.bf16.gmra.mxu0 %v2847
  %v2858 = vpop.f32.mrf.mxu0
  %v2859 = vadd.f32 0.0, %v2858
  %v2860 = vpop.f32.mrf.mxu0
  %2861 = vdwg.mxu0
  %2862 = vmatpush.bf16.msra.mxu0 0
  %2863 = vmatpush.bf16.msra.mxu0 0
  %2864 = vmatpush.bf16.msra.mxu0 0
  %2865 = vmatpush.bf16.msra.mxu0 0
  %2866 = vmatpush.bf16.msra.mxu0 %v2837
  %2867 = vmatpush.bf16.msra.mxu0 %v2835
  %2868 = vmatpush.bf16.msra.mxu0 %v2833
  %2869 = vmatpush.bf16.msra.mxu0 %v2831
  %2870 = vmatmul.bf16.gmra.mxu0 %v2847
  %v2871 = vpop.f32.mrf.mxu0
  %v2872 = vadd.f32 0.0, %v2871
  %v2873 = vpop.f32.mrf.mxu0
  %2874 = vdwg.mxu0
  %v2875 = vxor.u32 %v2859, 2147483648
  %v2876 = vxor.u32 %v2872, 2147483648
  %v2877 = vmul.f32 %v2875, 1.442695
  %v2878 = vpow.pop %v2877
  %v2879 = vmul.f32 %v2876, 1.442695
  %v2880 = vpow.pop %v2879
  %v2881 = vadd.f32 %v2878, 1.0
  %v2882 = vadd.f32 %v2880, 1.0
  %v2883 = vrcp.pop %v2881
  %v2884 = vmul.f32 %v2881, %v2883
  %v2885 = vsub.f32 1.0, %v2884
  %v2886 = vmul.f32 %v2883, %v2885
  %v2887 = vadd.f32 %v2883, %v2886
  %vm2888 = vweird.f32 %v2881
  %vm2889 = vweird.f32 %v2883
  %vm2890 = vmor %vm2888, %vm2889
  %v2891 = vsel %vm2890, %v2883, %v2887
  %v2892 = vand.u32 2147483647, %v2881
  %vm2893 = vcmp.eq.f32.partialorder %v2892, 8.507059e+37
  %v2894 = vand.u32 %v2881, 2147483648
  %v2895 = vor.u32 1.1754944e-38, %v2894
  %v2896 = vsel %vm2893, %v2895, %v2891
  %v2897 = vmul.f32 1.0, %v2896
  %v2898 = vrcp.pop %v2882
  %v2899 = vmul.f32 %v2882, %v2898
  %v2900 = vsub.f32 1.0, %v2899
  %v2901 = vmul.f32 %v2898, %v2900
  %v2902 = vadd.f32 %v2898, %v2901
  %vm2903 = vweird.f32 %v2882
  %vm2904 = vweird.f32 %v2898
  %vm2905 = vmor %vm2903, %vm2904
  %v2906 = vsel %vm2905, %v2898, %v2902
  %v2907 = vand.u32 2147483647, %v2882
  %vm2908 = vcmp.eq.f32.partialorder %v2907, 8.507059e+37
  %v2909 = vand.u32 %v2882, 2147483648
  %v2910 = vor.u32 1.1754944e-38, %v2909
  %v2911 = vsel %vm2908, %v2910, %v2906
  %v2912 = vmul.f32 1.0, %v2911
  %v2915 = vrot.slane %v2912, 7
  %vm2916 = vcmask 1040384
  %v2917 = vsel %vm2916, %v2897, %v2915
  %v2918 = vsel %vm2803, %v2897, %v2915
  %v2919 = vrot.slane %v2918, 1
  %v2922 = vlaneseq
  %vm2923 = vcmp.ge.s32.totalorder %v2922, 0
  %vm2924 = vcmp.lt.s32.totalorder %v2922, 256
  %vm2925 = vmand %vm2923, %vm2924
  %2926 = vst.msk [vmem:[%s10] sm:$0x3] %vm2925, %v2917
  %2927 = vst.msk [vmem:[%s10 + $0x2] sm:$0x3] %vm2925, %v2919
  // Predicated region
  $region42: #{_forward_impl.1} parent=0 // pred_check
    _
  $region43: #{_forward_impl.1} parent=0 // pred_check_branch
    %2929 = sbr.rel (0) target = $region45
  $region44: #{_forward_impl.1} parent=0 // pred_region
    _
  $region45: #{_forward_impl.1} parent=0 // pred_fallthru
    _
  // Predicated region
  $region46: #{_forward_impl.1} parent=0 // pred_check
    _
  $region47: #{_forward_impl.1} parent=0 // pred_check_branch
    %2931 = sbr.rel (0) target = $region49
  $region48: #{_forward_impl.1} parent=0 // pred_region
    _
  $region49: #{_forward_impl.1} parent=0 // pred_fallthru
    _

</llo_original>
